<compile_context>
chip_gen: v5e
topology: v5e:2x2
jax: 0.10.0
libtpu: 0.0.40
codegen_flags: <defaults>
</compile_context>

<pallas_src>
import jax
import jax.numpy as jnp
from jax.experimental import pallas as pl
from jax.experimental.pallas import tpu as pltpu

LANE = 128


def _ceil_to(v, m):
    return ((v + m - 1) // m) * m


def _pad2d(a, rows, cols):
    r, c = a.shape
    return jnp.pad(a, ((0, rows - r), (0, cols - c)))


# ----------------------------------------------------------------------------
# Pallas kernel: one grid step == one GraphConvolutionRes layer
# ----------------------------------------------------------------------------
def gcn_res_layer_kernel(x_ref, adj_ref, w_ref, b_ref, out_ref, h_ref):
    """h_ref (VMEM scratch, f32) carries activations across layers.

    w_ref holds the augmented weight  W' = [W | s*I]  (bf16, (P, 2P)), so
        hw = h @ W'      -> [ h@W | s*h ]
        z  = adj @ hw    -> [ adj@(h@W) | s*(adj@h) ]
    and the layer output is  maybe_relu(z[:, :P] + b) + z[:, P:].
    """
    l = pl.program_id(0)
    n_layers = pl.num_programs(0)
    half = w_ref.shape[1] // 2

    @pl.when(l == 0)
    def _():
        h_ref[...] = x_ref[...]                       # layer-0 input -> carried state

    h = h_ref[...]                                    # (N, P) f32 activations
    hw = jnp.dot(h.astype(jnp.bfloat16), w_ref[...],
                 preferred_element_type=jnp.float32)  # (N, 2P) = [h@W | s*h]
    z = jnp.dot(adj_ref[...], hw.astype(jnp.bfloat16),
                preferred_element_type=jnp.float32)   # (N, 2P), one MXU pass
    zc = z[:, :half] + b_ref[...]                     # adj @ (h@W) + b
    zres = z[:, half:]                                # s * (adj @ h)  (0 if no residual)

    @pl.when(l != n_layers - 1)
    def _():
        h_ref[...] = jnp.maximum(zc, 0.0) + zres      # relu then residual add

    @pl.when(l == n_layers - 1)
    def _():
        out_ref[...] = zc                             # last layer: no relu, no residual


# ----------------------------------------------------------------------------
# Parameter / adjacency construction (deterministic, in-script)
# ----------------------------------------------------------------------------
def xavier_uniform(key, fan_in, fan_out):
    bound = jnp.sqrt(6.0 / (fan_in + fan_out))
    return jax.random.uniform(key, (fan_in, fan_out), jnp.float32, -bound, bound)


def make_normalized_adj(key, n, edge_prob=0.05):
    """Dense stand-in for normalize_adj(dilate_graph(g)):
       random symmetric 0/1 adjacency + self loops, D^-1/2 A D^-1/2 normalized."""
    u = jax.random.uniform(key, (n, n))
    a = (u < edge_prob).astype(jnp.float32)
    a = jnp.maximum(a, a.T)                             # symmetric
    a = jnp.maximum(a, jnp.eye(n, dtype=jnp.float32))   # setdiag(1)
    deg = a.sum(axis=1)
    dinv = 1.0 / jnp.sqrt(deg)
    return a * dinv[:, None] * dinv[None, :]


class GCNResPallas:
    """GCNRes with layer_num=3: input_dim -> hidden -> hidden -> output_dim.
    Layer 1 (hidden -> hidden) exercises the in==out residual branch."""

    def __init__(self, key, input_dim, hidden_dim, output_dim, n_nodes):
        dims = [input_dim, hidden_dim, hidden_dim, output_dim]
        self.dims = dims
        self.n_layers = len(dims) - 1
        self.n_nodes = n_nodes
        self.pad_dim = _ceil_to(max(dims), LANE)        # = 128 here

        # residual taken iff in == out AND not last (matches the PyTorch forward)
        self.residual_flags = tuple(
            (dims[li] == dims[li + 1]) and (li != self.n_layers - 1)
            for li in range(self.n_layers))

        keys = jax.random.split(key, 2 * self.n_layers)
        self.weights, self.biases, self.adjs = [], [], []
        for li in range(self.n_layers):
            self.weights.append(xavier_uniform(keys[2 * li], dims[li], dims[li + 1]))
            self.biases.append(jnp.zeros((dims[li + 1],), jnp.float32))
            self.adjs.append(make_normalized_adj(keys[2 * li + 1], n_nodes))

        P = self.pad_dim
        eye = jnp.eye(P, dtype=jnp.float32)
        w_aug, b_pad = [], []
        for li in range(self.n_layers):
            s = 1.0 if self.residual_flags[li] else 0.0
            wp = _pad2d(self.weights[li], P, P)
            w_aug.append(jnp.concatenate([wp, s * eye], axis=1))        # (P, 2P)
            b_pad.append(_pad2d(self.biases[li].reshape(1, -1), 1, P))  # (1, P)

        # Stacked, MXU-ready (bf16) parameter tensors for the layer-grid kernel.
        self.adj_stack = jnp.stack(self.adjs).astype(jnp.bfloat16)      # (L, N, N)
        self.w_stack = jnp.stack(w_aug).astype(jnp.bfloat16)            # (L, P, 2P)
        self.b_stack = jnp.stack(b_pad).astype(jnp.float32)             # (L, 1, P)

    def __call__(self, x):
        N, P, L = self.n_nodes, self.pad_dim, self.n_layers
        xp = _pad2d(x.astype(jnp.float32), N, P)

        flops = L * (2 * N * P * (2 * P) + 2 * N * N * (2 * P))
        bytes_accessed = (xp.size * 4 + self.adj_stack.size * 2
                          + self.w_stack.size * 2 + self.b_stack.size * 4
                          + N * P * 4)

        out_pad = pl.pallas_call(
            gcn_res_layer_kernel,
            out_shape=jax.ShapeDtypeStruct((N, P), jnp.float32),
            grid_spec=pltpu.PrefetchScalarGridSpec(
                num_scalar_prefetch=0,
                grid=(L,),
                in_specs=[
                    pl.BlockSpec((N, P), lambda l: (0, 0)),               # x (layer-0 input)
                    pl.BlockSpec((None, N, N), lambda l: (l, 0, 0)),      # adj[l]  (bf16)
                    pl.BlockSpec((None, P, 2 * P), lambda l: (l, 0, 0)),  # W'[l]   (bf16)
                    pl.BlockSpec((None, 1, P), lambda l: (l, 0, 0)),      # b[l]    (f32)
                ],
                out_specs=pl.BlockSpec((N, P), lambda l: (0, 0)),
                scratch_shapes=[pltpu.VMEM((N, P), jnp.float32)],         # carried activations
            ),
            compiler_params=pltpu.CompilerParams(
                dimension_semantics=("arbitrary",)),                      # layer axis carries state
            cost_estimate=pl.CostEstimate(
                flops=flops, transcendentals=0, bytes_accessed=bytes_accessed),
        )(xp, self.adj_stack, self.w_stack, self.b_stack)

        return out_pad[:, :self.dims[-1]]


# ----------------------------------------------------------------------------
# References for validation
# ----------------------------------------------------------------------------
def reference_forward_f32(model, x):
    """Exact f32 semantics of the PyTorch module (eval mode)."""
    h = x.astype(jnp.float32)
    for li in range(model.n_layers):
        adj, w, b = model.adjs[li], model.weights[li], model.biases[li]
        last = li == model.n_layers - 1
        residual = model.residual_flags[li]
        x1 = adj @ h if residual else None
        y = adj @ (h @ w) + b
        if not last:
            y = jnp.maximum(y, 0.0)
            if residual:
                y = y + x1
        h = y
    return h


def reference_forward_bf16(model, x):
    """Mirror of the kernel's numerics: bf16 MXU inputs, f32 accumulation."""
    h = x.astype(jnp.float32)
    for li in range(model.n_layers):
        adj = model.adjs[li].astype(jnp.bfloat16)
        w = model.weights[li].astype(jnp.bfloat16)
        b = model.biases[li]
        last = li == model.n_layers - 1
        residual = model.residual_flags[li]
        hb = h.astype(jnp.bfloat16)
        xw = jnp.dot(hb, w, preferred_element_type=jnp.float32).astype(jnp.bfloat16)
        y = jnp.dot(adj, xw, preferred_element_type=jnp.float32) + b
        if not last:
            y = jnp.maximum(y, 0.0)
            if residual:
                y = y + jnp.dot(adj, hb, preferred_element_type=jnp.float32)
        h = y
    return h


if __name__ == "__main__":
    key = jax.random.PRNGKey(0)
    k_model, k_x = jax.random.split(key)

    N = 256            # number of graph nodes
    INPUT_DIM = 64
    HIDDEN_DIM = 32
    OUTPUT_DIM = 16

    model = GCNResPallas(k_model, INPUT_DIM, HIDDEN_DIM, OUTPUT_DIM, N)
    x = jax.random.normal(k_x, (N, INPUT_DIM), jnp.float32)

    out = jax.block_until_ready(model(x))
    assert out.shape == (N, OUTPUT_DIM)

    # Strict check vs a reference that mirrors the kernel's bf16-input /
    # f32-accumulate numerics (agreement to ~1-2 bf16 ulp of the intermediates;
    # residual diffs come only from reduction-order noise crossing bf16 rounding
    # boundaries in the intermediate casts).
    ref_bf16 = reference_forward_bf16(model, x)
    assert jnp.allclose(out, ref_bf16, atol=1e-2, rtol=1e-2), "mismatch vs bf16-mirror reference"

    # Sanity check vs the exact f32 PyTorch semantics: bounded by the documented
    # precision of feeding the MXU bf16 inputs (f32 accumulation).
    ref_f32 = reference_forward_f32(model, x)
    max_err = float(jnp.max(jnp.abs(out - ref_f32)))
    assert max_err < 1e-1, f"bf16 drift vs f32 reference too large: {max_err}"

    print("KERNEL_OK")
</pallas_src>

<mosaic_0001>
module attributes {stable_mosaic.version = 11 : i64} {
  func.func @gcn_res_layer_kernel(%arg0: i32, %arg1: memref<256x128xf32, #tpu.memory_space<vmem>>, %arg2: memref<1x256x256xbf16, #tpu.memory_space<vmem>>, %arg3: memref<1x128x256xbf16, #tpu.memory_space<vmem>>, %arg4: memref<1x1x128xf32, #tpu.memory_space<vmem>>, %arg5: memref<256x128xf32, #tpu.memory_space<vmem>>, %arg6: memref<256x128xf32, #tpu.memory_space<vmem>>) attributes {dimension_semantics = [#tpu.dimension_semantics<arbitrary>], iteration_bounds = array<i64: 3>, scalar_prefetch = 0 : i64, scratch_operands = 1 : i64, tpu.core_type = #tpu.core_type<tc>, window_params = [{pipeline_mode = #tpu.pipeline_mode<synchronous>, transform_indices = @transform_0, window_bounds = array<i64: 256, 128>}, {transform_indices = @transform_1, window_bounds = array<i64: 1, 256, 256>}, {transform_indices = @transform_2, window_bounds = array<i64: 1, 128, 256>}, {transform_indices = @transform_3, window_bounds = array<i64: 1, 1, 128>}, {pipeline_mode = #tpu.pipeline_mode<synchronous>, transform_indices = @transform_4, window_bounds = array<i64: 256, 128>}]} {
    %c0_i32 = arith.constant 0 : i32
    %0 = arith.cmpi eq, %arg0, %c0_i32 : i32
    %1 = arith.extui %0 : i1 to i32
    %c0_i32_0 = arith.constant 0 : i32
    %2 = arith.cmpi ne, %1, %c0_i32_0 : i32
    scf.if %2 {
      %c0_15 = arith.constant 0 : index
      %c0_16 = arith.constant 0 : index
      %24 = vector.load %arg1[%c0_15, %c0_16] : memref<256x128xf32, #tpu.memory_space<vmem>>, vector<256x128xf32>
      %c0_17 = arith.constant 0 : index
      %c0_18 = arith.constant 0 : index
      %25 = vector.load %arg6[%c0_17, %c0_18] : memref<256x128xf32, #tpu.memory_space<vmem>>, vector<256x128xf32>
      tpu.vector_store %arg6[%c0_17, %c0_18], %24 {strides = array<i32>} : memref<256x128xf32, #tpu.memory_space<vmem>>, vector<256x128xf32>,
    } else {
    }
    %c0 = arith.constant 0 : index
    %c0_1 = arith.constant 0 : index
    %3 = vector.load %arg6[%c0, %c0_1] : memref<256x128xf32, #tpu.memory_space<vmem>>, vector<256x128xf32>
    %4 = arith.truncf %3 : vector<256x128xf32> to vector<256x128xbf16>
    %c0_2 = arith.constant 0 : index
    %c0_3 = arith.constant 0 : index
    %c0_4 = arith.constant 0 : index
    %5 = vector.load %arg3[%c0_2, %c0_3, %c0_4] : memref<1x128x256xbf16, #tpu.memory_space<vmem>>, vector<1x128x256xbf16>
    %6 = vector.shape_cast %5 : vector<1x128x256xbf16> to vector<128x256xbf16>
    %cst = arith.constant dense<0.000000e+00> : vector<256x256xf32>
    %7 = tpu.matmul %4, %6, %cst {dimension_numbers = #tpu.dot_dimension_numbers<[1], [0], [0], [1], [0, 0, 1, 1], [], []>} : vector<256x128xbf16>, vector<128x256xbf16>, vector<256x256xf32> -> vector<256x256xf32>
    %c0_5 = arith.constant 0 : index
    %c0_6 = arith.constant 0 : index
    %c0_7 = arith.constant 0 : index
    %8 = vector.load %arg2[%c0_5, %c0_6, %c0_7] : memref<1x256x256xbf16, #tpu.memory_space<vmem>>, vector<1x256x256xbf16>
    %9 = vector.shape_cast %8 : vector<1x256x256xbf16> to vector<256x256xbf16>
    %10 = arith.truncf %7 : vector<256x256xf32> to vector<256x256xbf16>
    %cst_8 = arith.constant dense<0.000000e+00> : vector<256x256xf32>
    %11 = tpu.matmul %9, %10, %cst_8 {dimension_numbers = #tpu.dot_dimension_numbers<[1], [0], [0], [1], [0, 0, 1, 1], [], []>} : vector<256x256xbf16>, vector<256x256xbf16>, vector<256x256xf32> -> vector<256x256xf32>
    %12 = vector.extract_strided_slice %11 {offsets = [0, 0], sizes = [256, 128], strides = [1, 1]} : vector<256x256xf32> to vector<256x128xf32>
    %c0_9 = arith.constant 0 : index
    %c0_10 = arith.constant 0 : index
    %c0_11 = arith.constant 0 : index
    %13 = vector.load %arg4[%c0_9, %c0_10, %c0_11] : memref<1x1x128xf32, #tpu.memory_space<vmem>>, vector<1x1x128xf32>
    %14 = vector.shape_cast %13 : vector<1x1x128xf32> to vector<1x128xf32>
    %15 = vector.broadcast %14 : vector<1x128xf32> to vector<256x128xf32>
    %16 = arith.addf %12, %15 : vector<256x128xf32>
    %17 = vector.extract_strided_slice %11 {offsets = [0, 128], sizes = [256, 128], strides = [1, 1]} : vector<256x256xf32> to vector<256x128xf32>
    %c2_i32 = arith.constant 2 : i32
    %18 = arith.cmpi ne, %arg0, %c2_i32 : i32
    %19 = arith.extui %18 : i1 to i32
    %c0_i32_12 = arith.constant 0 : i32
    %20 = arith.cmpi ne, %19, %c0_i32_12 : i32
    scf.if %20 {
      %cst_15 = arith.constant 0.000000e+00 : f32
      %24 = vector.broadcast %cst_15 : f32 to vector<256x128xf32>
      %25 = arith.maximumf %16, %24 : vector<256x128xf32>
      %26 = arith.addf %25, %17 : vector<256x128xf32>
      %c0_16 = arith.constant 0 : index
      %c0_17 = arith.constant 0 : index
      %27 = vector.load %arg6[%c0_16, %c0_17] : memref<256x128xf32, #tpu.memory_space<vmem>>, vector<256x128xf32>
      tpu.vector_store %arg6[%c0_16, %c0_17], %26 {strides = array<i32>} : memref<256x128xf32, #tpu.memory_space<vmem>>, vector<256x128xf32>,
    } else {
    }
    %c2_i32_13 = arith.constant 2 : i32
    %21 = arith.cmpi eq, %arg0, %c2_i32_13 : i32
    %22 = arith.extui %21 : i1 to i32
    %c0_i32_14 = arith.constant 0 : i32
    %23 = arith.cmpi ne, %22, %c0_i32_14 : i32
    scf.if %23 {
      %c0_15 = arith.constant 0 : index
      %c0_16 = arith.constant 0 : index
      %24 = vector.load %arg5[%c0_15, %c0_16] : memref<256x128xf32, #tpu.memory_space<vmem>>, vector<256x128xf32>
      tpu.vector_store %arg5[%c0_15, %c0_16], %16 {strides = array<i32>} : memref<256x128xf32, #tpu.memory_space<vmem>>, vector<256x128xf32>,
    } else {
    }
    return
  }
  func.func @transform_0(%arg0: i32) -> (i32, i32) {
    %c0_i32 = arith.constant 0 : i32
    %c0_i32_0 = arith.constant 0 : i32
    %c0_i32_1 = arith.constant 0 : i32
    return %c0_i32, %c0_i32_0 : i32, i32
  }
  func.func @transform_1(%arg0: i32) -> (i32, i32, i32) {
    %c0_i32 = arith.constant 0 : i32
    %c0_i32_0 = arith.constant 0 : i32
    %c0_i32_1 = arith.constant 0 : i32
    return %arg0, %c0_i32, %c0_i32_0 : i32, i32, i32
  }
  func.func @transform_2(%arg0: i32) -> (i32, i32, i32) {
    %c0_i32 = arith.constant 0 : i32
    %c0_i32_0 = arith.constant 0 : i32
    %c0_i32_1 = arith.constant 0 : i32
    return %arg0, %c0_i32, %c0_i32_0 : i32, i32, i32
  }
  func.func @transform_3(%arg0: i32) -> (i32, i32, i32) {
    %c0_i32 = arith.constant 0 : i32
    %c0_i32_0 = arith.constant 0 : i32
    %c0_i32_1 = arith.constant 0 : i32
    return %arg0, %c0_i32, %c0_i32_0 : i32, i32, i32
  }
  func.func @transform_4(%arg0: i32) -> (i32, i32) {
    %c0_i32 = arith.constant 0 : i32
    %c0_i32_0 = arith.constant 0 : i32
    %c0_i32_1 = arith.constant 0 : i32
    return %c0_i32, %c0_i32_0 : i32, i32
  }
}

</mosaic_0001>

<llo_original>
// kernel: tpu_custom_call.1
$region0: #{tpu_custom_call.1}
  #allocation0 [shape = 'u32[]', space=smem, size = 0x4, offset = 0x4, fixed_abs, tag = 'smem constant byte address 0x4 - core index']
  #allocation1 [shape = 'u32[72,128]{1,0:T(1,128)}', space=vmem, size = 0x9000, scoped, tag = 'internal scratch']
  #allocation2 [shape = 'f32[256,128]{1,0:T(8,128)}', space=vmem, size = 0x20000, scoped, tag = 'scratch operand']
  %s0 = inlined_call_operand.hbm [shape: f32[256,128], index: 0, kind: input, shape index: {}]
  %s1 = inlined_call_operand.hbm [shape: bf16[3,256,256], index: 1, kind: input, shape index: {}]
  %s2 = inlined_call_operand.hbm [shape: bf16[3,128,256], index: 2, kind: input, shape index: {}]
  %s3 = inlined_call_operand.hbm [shape: f32[3,1,128], index: 3, kind: input, shape index: {}]
  %s4 = inlined_call_operand.hbm [shape: f32[256,128], index: 4, kind: output, shape index: {}]
  %s5 = sld [smem:[#allocation0]]
  $region77: #{tpu_custom_call.1} parent=0
    _
  %s7 = ssub.s32 1, %s5
  %s8 = scalar_select 0, %s7, %s5
  $region1: #{tpu_custom_call.1} parent=0
    #allocation3 [shape = 'u8[131072]{0}', space=vmem, size = 0x20000, scoped, tag = 'input window, operand 0, single buffered']
    #allocation4 [shape = 's32[2]{0}', space=sflag, size = 0x8, scoped, tag = 'scoped memory for tpu_custom_call.1']
    #allocation5 [shape = 's32[2]{0}', space=sflag, size = 0x8, scoped, tag = 'scoped memory for tpu_custom_call.1']
    #allocation6 [shape = 'u8[262144]{0}', space=vmem, size = 0x40000, scoped, tag = 'input window, operand 1']
    #allocation7 [shape = 's32[2]{0}', space=sflag, size = 0x8, scoped, tag = 'scoped memory for tpu_custom_call.1']
    #allocation8 [shape = 'u8[131072]{0}', space=vmem, size = 0x20000, scoped, tag = 'input window, operand 2']
    #allocation9 [shape = 'u8[1024]{0}', space=vmem, size = 0x400, scoped, tag = 'input window, operand 3']
    #allocation10 [shape = 's32[2]{0}', space=sflag, size = 0x8, scoped, tag = 'scoped memory for tpu_custom_call.1']
    #allocation11 [shape = 'u8[131072]{0}', space=vmem, size = 0x20000, scoped, tag = 'output window, operand 0, single buffered']
    %9 = vsyncpa [#allocation4], 0
    %10 = vsyncpa [#allocation7], 0
    %s11 = scalar_lea.sflag [#allocation7], 1
    %12 = vsyncpa %s11, 0
    %13 = vsyncpa [#allocation10], 0
    %s14 = scalar_lea.sflag [#allocation10], 1
    %15 = vsyncpa %s14, 0
    %16 = vsyncpa [#allocation5], 0
    loop: start=0, step=1, limit=5
    $region2: #{tpu_custom_call.1} parent=1 // loop_pre_header
      _
    $region3: #{tpu_custom_call.1} parent=1 // loop_header
      %s18 = sphi 0, %s22
      %p19 = scmp.ge.s32.totalorder %s18, 5
      %s26 = sphi 0, %s26
      %s28 = sphi 0, %s26
      %s29 = sphi 0, %s28
      %s43 = sphi 0, %s29
      %s49 = sphi 0, %s51
      %s52 = sphi 0, %s49
      %s53 = sphi 0, %s52
      %s69 = sphi 0, %s53
      %s75 = sphi 0, %s77
      %s78 = sphi 0, %s75
      %s79 = sphi 0, %s78
      %s95 = sphi 0, %s79
      %s101 = sphi 0, %s103
      %s104 = sphi 0, %s101
      %s105 = sphi 0, %s104
      %s121 = sphi 0, %s105
      %s125 = sphi 0, %s125
      %s127 = sphi 0, %s125
      %s128 = sphi 0, %s127
      %s142 = sphi 0, %s128
    $region4: #{tpu_custom_call.1} parent=1 // loop_header_branch
      %21 = sbr.rel (%p19) target = $region8
    $region5: #{tpu_custom_call.1} parent=1 // loop_body
      %s23 = ssub.s32 %s18, 1
      %s24 = ssub.s32 %s18, 2
      %s25 = sadd.s32 %s18, 1
      %s27 = sadd.s32 %s26, 1
      %p30 = scmp.eq.s32.totalorder %s18, 2
      %p31 = scmp.ne.s32.totalorder %s26, %s28
      %p32 = scmp.eq.s32.totalorder %s18, 0
      %p33 = por %p31, %p32
      %p34 = scmp.ne.s32.totalorder %s26, %s28
      %p35 = scmp.eq.s32.totalorder %s23, 2
      %p36 = por %p34, %p35
      %p37 = scmp.ne.s32.totalorder %s28, %s29
      %p38 = scmp.eq.s32.totalorder %s23, 0
      %p39 = por %p37, %p38
      %p40 = scmp.ne.s32.totalorder %s28, %s29
      %p41 = scmp.eq.s32.totalorder %s24, 2
      %p42 = por %p40, %p41
      %p44 = scmp.ne.s32.totalorder %s29, %s43
      %p45 = scmp.eq.s32.totalorder %s24, 0
      %p46 = por %p44, %p45
      %s47 = ssub.s32 %s18, %s25
      %p48 = scmp.eq.s32.totalorder %s47, 0
      %s50 = sadd.s32 %s49, 1
      %s51 = scalar_select %p48, %s49, %s50
      %p54 = pneg %p48
      %p55 = scmp.eq.s32.totalorder %s18, 2
      %p56 = por %p54, %p55
      %p57 = scmp.ne.s32.totalorder %s49, %s52
      %p58 = scmp.eq.s32.totalorder %s18, 0
      %p59 = por %p57, %p58
      %p60 = scmp.ne.s32.totalorder %s49, %s52
      %p61 = scmp.eq.s32.totalorder %s23, 2
      %p62 = por %p60, %p61
      %p63 = scmp.ne.s32.totalorder %s52, %s53
      %p64 = scmp.eq.s32.totalorder %s23, 0
      %p65 = por %p63, %p64
      %p66 = scmp.ne.s32.totalorder %s52, %s53
      %p67 = scmp.eq.s32.totalorder %s24, 2
      %p68 = por %p66, %p67
      %p70 = scmp.ne.s32.totalorder %s53, %s69
      %p71 = scmp.eq.s32.totalorder %s24, 0
      %p72 = por %p70, %p71
      %s73 = ssub.s32 %s18, %s25
      %p74 = scmp.eq.s32.totalorder %s73, 0
      %s76 = sadd.s32 %s75, 1
      %s77 = scalar_select %p74, %s75, %s76
      %p80 = pneg %p74
      %p81 = scmp.eq.s32.totalorder %s18, 2
      %p82 = por %p80, %p81
      %p83 = scmp.ne.s32.totalorder %s75, %s78
      %p84 = scmp.eq.s32.totalorder %s18, 0
      %p85 = por %p83, %p84
      %p86 = scmp.ne.s32.totalorder %s75, %s78
      %p87 = scmp.eq.s32.totalorder %s23, 2
      %p88 = por %p86, %p87
      %p89 = scmp.ne.s32.totalorder %s78, %s79
      %p90 = scmp.eq.s32.totalorder %s23, 0
      %p91 = por %p89, %p90
      %p92 = scmp.ne.s32.totalorder %s78, %s79
      %p93 = scmp.eq.s32.totalorder %s24, 2
      %p94 = por %p92, %p93
      %p96 = scmp.ne.s32.totalorder %s79, %s95
      %p97 = scmp.eq.s32.totalorder %s24, 0
      %p98 = por %p96, %p97
      %s99 = ssub.s32 %s18, %s25
      %p100 = scmp.eq.s32.totalorder %s99, 0
      %s102 = sadd.s32 %s101, 1
      %s103 = scalar_select %p100, %s101, %s102
      %p106 = pneg %p100
      %p107 = scmp.eq.s32.totalorder %s18, 2
      %p108 = por %p106, %p107
      %p109 = scmp.ne.s32.totalorder %s101, %s104
      %p110 = scmp.eq.s32.totalorder %s18, 0
      %p111 = por %p109, %p110
      %p112 = scmp.ne.s32.totalorder %s101, %s104
      %p113 = scmp.eq.s32.totalorder %s23, 2
      %p114 = por %p112, %p113
      %p115 = scmp.ne.s32.totalorder %s104, %s105
      %p116 = scmp.eq.s32.totalorder %s23, 0
      %p117 = por %p115, %p116
      %p118 = scmp.ne.s32.totalorder %s104, %s105
      %p119 = scmp.eq.s32.totalorder %s24, 2
      %p120 = por %p118, %p119
      %p122 = scmp.ne.s32.totalorder %s105, %s121
      %p123 = scmp.eq.s32.totalorder %s24, 0
      %p124 = por %p122, %p123
      %s126 = sadd.s32 %s125, 1
      %p129 = scmp.eq.s32.totalorder %s18, 2
      %p130 = scmp.ne.s32.totalorder %s125, %s127
      %p131 = scmp.eq.s32.totalorder %s18, 0
      %p132 = por %p130, %p131
      %p133 = scmp.ne.s32.totalorder %s125, %s127
      %p134 = scmp.eq.s32.totalorder %s23, 2
      %p135 = por %p133, %p134
      %p136 = scmp.ne.s32.totalorder %s127, %s128
      %p137 = scmp.eq.s32.totalorder %s23, 0
      %p138 = por %p136, %p137
      %p139 = scmp.ne.s32.totalorder %s127, %s128
      %p140 = scmp.eq.s32.totalorder %s24, 2
      %p141 = por %p139, %p140
      %p143 = scmp.ne.s32.totalorder %s128, %s142
      %p144 = scmp.eq.s32.totalorder %s24, 0
      %p145 = por %p143, %p144
      %p146 = scmp.le.s32.totalorder 1, %s18
      %p147 = scmp.lt.s32.totalorder %s18, 4
      %p148 = pnand %p146, %p147
      %p149 = pneg %p148
      // Predicated region
      $region9: #{tpu_custom_call.1} parent=5 // pred_check
        _
      $region10: #{tpu_custom_call.1} parent=5 // pred_check_branch
        %151 = sbr.rel (%p148) target = $region12
      $region11: #{tpu_custom_call.1} parent=5 // pred_region
        %s152 = ssub.s32 %s18, 1
        // Predicated region
        $region13: #{tpu_custom_call.1} parent=11 // pred_check
          %p153 = pneg %p39
        $region14: #{tpu_custom_call.1} parent=11 // pred_check_branch
          %155 = sbr.rel (%p153) target = $region16
        $region15: #{tpu_custom_call.1} parent=11 // pred_region
          %157 = vsyncadd [#allocation4], 0
          %s158 = sshll.u32 %s0, 4
          %s159 = int_to_ptr.hbm [resolvable:$true] %s158
          %s160 = sshll.u32 [#allocation3], 4
          %s161 = int_to_ptr.vmem [resolvable:$true] %s160
          %166 = dma.hbm_to_vmem [thread:$0]  %s159, 4096, %s161, [#allocation4], 128, 128, 8
        $region16: #{tpu_custom_call.1} parent=11 // pred_fallthru
          _
      $region12: #{tpu_custom_call.1} parent=5 // pred_fallthru
        _
      %p167 = scmp.lt.s32.totalorder %s18, 3
      // Predicated region
      $region17: #{tpu_custom_call.1} parent=5 // pred_check
        %p168 = pneg %p167
      $region18: #{tpu_custom_call.1} parent=5 // pred_check_branch
        %170 = sbr.rel (%p168) target = $region20
      $region19: #{tpu_custom_call.1} parent=5 // pred_region
        // Predicated region
        $region21: #{tpu_custom_call.1} parent=19 // pred_check
          %p171 = pneg %p59
        $region22: #{tpu_custom_call.1} parent=19 // pred_check_branch
          %173 = sbr.rel (%p171) target = $region24
        $region23: #{tpu_custom_call.1} parent=19 // pred_region
          %s174 = sand.u32 %s18, 1
          %s175 = scalar_lea.sflag [#allocation7], %s174
          %s176 = sand.u32 %s49, 1
          %s177 = smul.addr %s176, 256
          %s178 = scalar_lea.vmem [#allocation6], %s177
          %180 = vsyncadd %s175, 0
          %s181 = smul.addr %s18, 64
          %s182 = smul.addr %s181, 4
          %s183 = scalar_lea.hbm %s1, %s182
          %s184 = sshll.u32 %s183, 4
          %s185 = int_to_ptr.hbm [resolvable:$true] %s184
          %s186 = sshll.u32 %s178, 4
          %s187 = int_to_ptr.vmem [resolvable:$true] %s186
          %192 = dma.hbm_to_vmem [thread:$0]  %s185, 4096, %s187, %s175, 128, 128, 8
        $region24: #{tpu_custom_call.1} parent=19 // pred_fallthru
          _
        // Predicated region
        $region25: #{tpu_custom_call.1} parent=19 // pred_check
          %p193 = pneg %p85
        $region26: #{tpu_custom_call.1} parent=19 // pred_check_branch
          %195 = sbr.rel (%p193) target = $region28
        $region27: #{tpu_custom_call.1} parent=19 // pred_region
          %s196 = sand.u32 %s18, 1
          %s197 = scalar_lea.sflag [#allocation7], %s196
          %s198 = sand.u32 %s75, 1
          %s199 = smul.addr %s198, 128
          %s200 = scalar_lea.vmem [#allocation8], %s199
          %202 = vsyncadd %s197, 0
          %s203 = smul.addr %s18, 32
          %s204 = smul.addr %s203, 4
          %s205 = scalar_lea.hbm %s2, %s204
          %s206 = sshll.u32 %s205, 4
          %s207 = int_to_ptr.hbm [resolvable:$true] %s206
          %s208 = sshll.u32 %s200, 4
          %s209 = int_to_ptr.vmem [resolvable:$true] %s208
          %214 = dma.hbm_to_vmem [thread:$0]  %s207, 2048, %s209, %s197, 128, 128, 8
        $region28: #{tpu_custom_call.1} parent=19 // pred_fallthru
          _
        // Predicated region
        $region29: #{tpu_custom_call.1} parent=19 // pred_check
          %p215 = pneg %p111
        $region30: #{tpu_custom_call.1} parent=19 // pred_check_branch
          %217 = sbr.rel (%p215) target = $region32
        $region31: #{tpu_custom_call.1} parent=19 // pred_region
          %s218 = sand.u32 %s101, 1
          %s219 = scalar_lea.sflag [#allocation10], %s218
          %s220 = sand.u32 %s101, 1
          %s221 = scalar_lea.vmem [#allocation9], %s220
          %223 = vsyncadd %s219, 0
          %s224 = scalar_lea.hbm %s3, %s18
          %s226 = sshll.u32 %s224, 4
          %s227 = int_to_ptr.hbm [resolvable:$true] %s226
          %s228 = sshll.u32 %s221, 4
          %s229 = int_to_ptr.vmem [resolvable:$true] %s228
          %231 = dma.hbm_to_vmem [thread:$0]  %s227, 16, %s229, %s219
        $region32: #{tpu_custom_call.1} parent=19 // pred_fallthru
          _
      $region20: #{tpu_custom_call.1} parent=5 // pred_fallthru
        _
      %p232 = scmp.le.s32.totalorder 1, %s18
      %p233 = scmp.lt.s32.totalorder %s18, 4
      %p234 = pnand %p232, %p233
      %p235 = pneg %p234
      // Predicated region
      $region33: #{tpu_custom_call.1} parent=5 // pred_check
        _
      $region34: #{tpu_custom_call.1} parent=5 // pred_check_branch
        %237 = sbr.rel (%p234) target = $region36
      $region35: #{tpu_custom_call.1} parent=5 // pred_region
        %s238 = ssub.s32 %s18, 1
        // Predicated region
        $region37: #{tpu_custom_call.1} parent=35 // pred_check
          %p239 = pneg %p39
        $region38: #{tpu_custom_call.1} parent=35 // pred_check_branch
          %241 = sbr.rel (%p239) target = $region40
        $region39: #{tpu_custom_call.1} parent=35 // pred_region
          %243 = dma.done [#allocation4], 4096
        $region40: #{tpu_custom_call.1} parent=35 // pred_fallthru
          _
        %s244 = sand.u32 %s23, 1
        %s245 = scalar_lea.sflag [#allocation7], %s244
        %s246 = sand.u32 %s52, 1
        %s247 = smul.addr %s246, 256
        %s248 = scalar_lea.vmem [#allocation6], %s247
        // Predicated region
        $region41: #{tpu_custom_call.1} parent=35 // pred_check
          %p249 = pneg %p65
        $region42: #{tpu_custom_call.1} parent=35 // pred_check_branch
          %251 = sbr.rel (%p249) target = $region44
        $region43: #{tpu_custom_call.1} parent=35 // pred_region
          %253 = dma.done %s245, 4096
        $region44: #{tpu_custom_call.1} parent=35 // pred_fallthru
          _
        %s254 = sand.u32 %s23, 1
        %s255 = scalar_lea.sflag [#allocation7], %s254
        %s256 = sand.u32 %s78, 1
        %s257 = smul.addr %s256, 128
        %s258 = scalar_lea.vmem [#allocation8], %s257
        // Predicated region
        $region45: #{tpu_custom_call.1} parent=35 // pred_check
          %p259 = pneg %p91
        $region46: #{tpu_custom_call.1} parent=35 // pred_check_branch
          %261 = sbr.rel (%p259) target = $region48
        $region47: #{tpu_custom_call.1} parent=35 // pred_region
          %263 = dma.done %s255, 2048
        $region48: #{tpu_custom_call.1} parent=35 // pred_fallthru
          _
        %s264 = sand.u32 %s104, 1
        %s265 = scalar_lea.sflag [#allocation10], %s264
        %s266 = sand.u32 %s104, 1
        %s267 = scalar_lea.vmem [#allocation9], %s266
        // Predicated region
        $region49: #{tpu_custom_call.1} parent=35 // pred_check
          %p268 = pneg %p117
        $region50: #{tpu_custom_call.1} parent=35 // pred_check_branch
          %270 = sbr.rel (%p268) target = $region52
        $region51: #{tpu_custom_call.1} parent=35 // pred_region
          %272 = dma.done %s265, 16
        $region52: #{tpu_custom_call.1} parent=35 // pred_fallthru
          _
        %p273 = pneg %p39
        %p274 = pneg %p36
        %s275 = sand.u32 %s23, 1
        %s276 = scalar_lea.sflag [#allocation7], %s275
        %s277 = sand.u32 %s52, 1
        %s278 = smul.addr %s277, 256
        %s279 = scalar_lea.vmem [#allocation6], %s278
        %p280 = pneg %p65
        %p281 = pneg %p62
        %s282 = sand.u32 %s23, 1
        %s283 = scalar_lea.sflag [#allocation7], %s282
        %s284 = sand.u32 %s78, 1
        %s285 = smul.addr %s284, 128
        %s286 = scalar_lea.vmem [#allocation8], %s285
        %p287 = pneg %p91
        %p288 = pneg %p88
        %s289 = sand.u32 %s104, 1
        %s290 = scalar_lea.sflag [#allocation10], %s289
        %s291 = sand.u32 %s104, 1
        %s292 = scalar_lea.vmem [#allocation9], %s291
        %p293 = pneg %p117
        %p294 = pneg %p114
        %p295 = pneg %p138
        %p296 = pneg %p135
        %p297 = scmp.eq.s32.totalorder %s23, 0
        // Predicated region
        $region53: #{tpu_custom_call.1} parent=35 // pred_check
          %p298 = pneg %p297
        $region54: #{tpu_custom_call.1} parent=35 // pred_check_branch
          %300 = sbr.rel (%p298) target = $region56
        $region55: #{tpu_custom_call.1} parent=35 // pred_region
          %v301 = vld [vmem:[#allocation3] sm:$0xff]
          %v302 = vld [vmem:[#allocation3 + $0x8] sm:$0xff]
          %v303 = vld [vmem:[#allocation3 + $0x10] sm:$0xff]
          %v304 = vld [vmem:[#allocation3 + $0x18] sm:$0xff]
          %v305 = vld [vmem:[#allocation3 + $0x20] sm:$0xff]
          %v306 = vld [vmem:[#allocation3 + $0x28] sm:$0xff]
          %v307 = vld [vmem:[#allocation3 + $0x30] sm:$0xff]
          %v308 = vld [vmem:[#allocation3 + $0x38] sm:$0xff]
          %v309 = vld [vmem:[#allocation3 + $0x40] sm:$0xff]
          %v310 = vld [vmem:[#allocation3 + $0x48] sm:$0xff]
          %v311 = vld [vmem:[#allocation3 + $0x50] sm:$0xff]
          %v312 = vld [vmem:[#allocation3 + $0x58] sm:$0xff]
          %v313 = vld [vmem:[#allocation3 + $0x60] sm:$0xff]
          %v314 = vld [vmem:[#allocation3 + $0x68] sm:$0xff]
          %v315 = vld [vmem:[#allocation3 + $0x70] sm:$0xff]
          %v316 = vld [vmem:[#allocation3 + $0x78] sm:$0xff]
          %v317 = vld [vmem:[#allocation3 + $0x80] sm:$0xff]
          %v318 = vld [vmem:[#allocation3 + $0x88] sm:$0xff]
          %v319 = vld [vmem:[#allocation3 + $0x90] sm:$0xff]
          %v320 = vld [vmem:[#allocation3 + $0x98] sm:$0xff]
          %v321 = vld [vmem:[#allocation3 + $0xa0] sm:$0xff]
          %v322 = vld [vmem:[#allocation3 + $0xa8] sm:$0xff]
          %v323 = vld [vmem:[#allocation3 + $0xb0] sm:$0xff]
          %v324 = vld [vmem:[#allocation3 + $0xb8] sm:$0xff]
          %v325 = vld [vmem:[#allocation3 + $0xc0] sm:$0xff]
          %v326 = vld [vmem:[#allocation3 + $0xc8] sm:$0xff]
          %v327 = vld [vmem:[#allocation3 + $0xd0] sm:$0xff]
          %v328 = vld [vmem:[#allocation3 + $0xd8] sm:$0xff]
          %v329 = vld [vmem:[#allocation3 + $0xe0] sm:$0xff]
          %v330 = vld [vmem:[#allocation3 + $0xe8] sm:$0xff]
          %v331 = vld [vmem:[#allocation3 + $0xf0] sm:$0xff]
          %v332 = vld [vmem:[#allocation3 + $0xf8] sm:$0xff]
          %333 = vst [vmem:[#allocation2] sm:$0xff] %v301
          %334 = vst [vmem:[#allocation2 + $0x8] sm:$0xff] %v302
          %335 = vst [vmem:[#allocation2 + $0x10] sm:$0xff] %v303
          %336 = vst [vmem:[#allocation2 + $0x18] sm:$0xff] %v304
          %337 = vst [vmem:[#allocation2 + $0x20] sm:$0xff] %v305
          %338 = vst [vmem:[#allocation2 + $0x28] sm:$0xff] %v306
          %339 = vst [vmem:[#allocation2 + $0x30] sm:$0xff] %v307
          %340 = vst [vmem:[#allocation2 + $0x38] sm:$0xff] %v308
          %341 = vst [vmem:[#allocation2 + $0x40] sm:$0xff] %v309
          %342 = vst [vmem:[#allocation2 + $0x48] sm:$0xff] %v310
          %343 = vst [vmem:[#allocation2 + $0x50] sm:$0xff] %v311
          %344 = vst [vmem:[#allocation2 + $0x58] sm:$0xff] %v312
          %345 = vst [vmem:[#allocation2 + $0x60] sm:$0xff] %v313
          %346 = vst [vmem:[#allocation2 + $0x68] sm:$0xff] %v314
          %347 = vst [vmem:[#allocation2 + $0x70] sm:$0xff] %v315
          %348 = vst [vmem:[#allocation2 + $0x78] sm:$0xff] %v316
          %349 = vst [vmem:[#allocation2 + $0x80] sm:$0xff] %v317
          %350 = vst [vmem:[#allocation2 + $0x88] sm:$0xff] %v318
          %351 = vst [vmem:[#allocation2 + $0x90] sm:$0xff] %v319
          %352 = vst [vmem:[#allocation2 + $0x98] sm:$0xff] %v320
          %353 = vst [vmem:[#allocation2 + $0xa0] sm:$0xff] %v321
          %354 = vst [vmem:[#allocation2 + $0xa8] sm:$0xff] %v322
          %355 = vst [vmem:[#allocation2 + $0xb0] sm:$0xff] %v323
          %356 = vst [vmem:[#allocation2 + $0xb8] sm:$0xff] %v324
          %357 = vst [vmem:[#allocation2 + $0xc0] sm:$0xff] %v325
          %358 = vst [vmem:[#allocation2 + $0xc8] sm:$0xff] %v326
          %359 = vst [vmem:[#allocation2 + $0xd0] sm:$0xff] %v327
          %360 = vst [vmem:[#allocation2 + $0xd8] sm:$0xff] %v328
          %361 = vst [vmem:[#allocation2 + $0xe0] sm:$0xff] %v329
          %362 = vst [vmem:[#allocation2 + $0xe8] sm:$0xff] %v330
          %363 = vst [vmem:[#allocation2 + $0xf0] sm:$0xff] %v331
          %364 = vst [vmem:[#allocation2 + $0xf8] sm:$0xff] %v332
        $region56: #{tpu_custom_call.1} parent=35 // pred_fallthru
          _
        %v365 = vld [vmem:[#allocation2] sm:$0xff]
        %v366 = vld [vmem:[#allocation2 + $0x8] sm:$0xff]
        %v367 = vld [vmem:[#allocation2 + $0x10] sm:$0xff]
        %v368 = vld [vmem:[#allocation2 + $0x18] sm:$0xff]
        %v369 = vld [vmem:[#allocation2 + $0x20] sm:$0xff]
        %v370 = vld [vmem:[#allocation2 + $0x28] sm:$0xff]
        %v371 = vld [vmem:[#allocation2 + $0x30] sm:$0xff]
        %v372 = vld [vmem:[#allocation2 + $0x38] sm:$0xff]
        %v373 = vld [vmem:[#allocation2 + $0x40] sm:$0xff]
        %v374 = vld [vmem:[#allocation2 + $0x48] sm:$0xff]
        %v375 = vld [vmem:[#allocation2 + $0x50] sm:$0xff]
        %v376 = vld [vmem:[#allocation2 + $0x58] sm:$0xff]
        %v377 = vld [vmem:[#allocation2 + $0x60] sm:$0xff]
        %v378 = vld [vmem:[#allocation2 + $0x68] sm:$0xff]
        %v379 = vld [vmem:[#allocation2 + $0x70] sm:$0xff]
        %v380 = vld [vmem:[#allocation2 + $0x78] sm:$0xff]
        %v381 = vld [vmem:[#allocation2 + $0x80] sm:$0xff]
        %v382 = vld [vmem:[#allocation2 + $0x88] sm:$0xff]
        %v383 = vld [vmem:[#allocation2 + $0x90] sm:$0xff]
        %v384 = vld [vmem:[#allocation2 + $0x98] sm:$0xff]
        %v385 = vld [vmem:[#allocation2 + $0xa0] sm:$0xff]
        %v386 = vld [vmem:[#allocation2 + $0xa8] sm:$0xff]
        %v387 = vld [vmem:[#allocation2 + $0xb0] sm:$0xff]
        %v388 = vld [vmem:[#allocation2 + $0xb8] sm:$0xff]
        %v389 = vld [vmem:[#allocation2 + $0xc0] sm:$0xff]
        %v390 = vld [vmem:[#allocation2 + $0xc8] sm:$0xff]
        %v391 = vld [vmem:[#allocation2 + $0xd0] sm:$0xff]
        %v392 = vld [vmem:[#allocation2 + $0xd8] sm:$0xff]
        %v393 = vld [vmem:[#allocation2 + $0xe0] sm:$0xff]
        %v394 = vld [vmem:[#allocation2 + $0xe8] sm:$0xff]
        %v395 = vld [vmem:[#allocation2 + $0xf0] sm:$0xff]
        %v396 = vld [vmem:[#allocation2 + $0xf8] sm:$0xff]
        %v397 = vpack.c.bf16 %v366, %v365
        %v398 = vpack.c.bf16 %v368, %v367
        %v399 = vpack.c.bf16 %v370, %v369
        %v400 = vpack.c.bf16 %v372, %v371
        %v401 = vpack.c.bf16 %v374, %v373
        %v402 = vpack.c.bf16 %v376, %v375
        %v403 = vpack.c.bf16 %v378, %v377
        %v404 = vpack.c.bf16 %v380, %v379
        %v405 = vpack.c.bf16 %v382, %v381
        %v406 = vpack.c.bf16 %v384, %v383
        %v407 = vpack.c.bf16 %v386, %v385
        %v408 = vpack.c.bf16 %v388, %v387
        %v409 = vpack.c.bf16 %v390, %v389
        %v410 = vpack.c.bf16 %v392, %v391
        %v411 = vpack.c.bf16 %v394, %v393
        %v412 = vpack.c.bf16 %v396, %v395
        %v413 = vld [vmem:[%s258] sm:$0xff]
        %v414 = vld [vmem:[%s258 + $0x8] sm:$0xff]
        %v415 = vld [vmem:[%s258 + $0x10] sm:$0xff]
        %v416 = vld [vmem:[%s258 + $0x18] sm:$0xff]
        %v417 = vld [vmem:[%s258 + $0x20] sm:$0xff]
        %v418 = vld [vmem:[%s258 + $0x28] sm:$0xff]
        %v419 = vld [vmem:[%s258 + $0x30] sm:$0xff]
        %v420 = vld [vmem:[%s258 + $0x38] sm:$0xff]
        %v421 = vld [vmem:[%s258 + $0x40] sm:$0xff]
        %v422 = vld [vmem:[%s258 + $0x48] sm:$0xff]
        %v423 = vld [vmem:[%s258 + $0x50] sm:$0xff]
        %v424 = vld [vmem:[%s258 + $0x58] sm:$0xff]
        %v425 = vld [vmem:[%s258 + $0x60] sm:$0xff]
        %v426 = vld [vmem:[%s258 + $0x68] sm:$0xff]
        %v427 = vld [vmem:[%s258 + $0x70] sm:$0xff]
        %v428 = vld [vmem:[%s258 + $0x78] sm:$0xff]
        %v445 = vunpack.c.l.b16 %v413
        %v446 = vunpack.c.h.b16 %v413
        %v447 = vunpack.c.l.b16 %v414
        %v448 = vunpack.c.h.b16 %v414
        %v449 = vunpack.c.l.b16 %v415
        %v450 = vunpack.c.h.b16 %v415
        %v451 = vunpack.c.l.b16 %v416
        %v452 = vunpack.c.h.b16 %v416
        %v453 = vunpack.c.l.b16 %v417
        %v454 = vunpack.c.h.b16 %v417
        %v455 = vunpack.c.l.b16 %v418
        %v456 = vunpack.c.h.b16 %v418
        %v457 = vunpack.c.l.b16 %v419
        %v458 = vunpack.c.h.b16 %v419
        %v459 = vunpack.c.l.b16 %v420
        %v460 = vunpack.c.h.b16 %v420
        %v461 = vunpack.c.l.b16 %v421
        %v462 = vunpack.c.h.b16 %v421
        %v463 = vunpack.c.l.b16 %v422
        %v464 = vunpack.c.h.b16 %v422
        %v465 = vunpack.c.l.b16 %v423
        %v466 = vunpack.c.h.b16 %v423
        %v467 = vunpack.c.l.b16 %v424
        %v468 = vunpack.c.h.b16 %v424
        %v469 = vunpack.c.l.b16 %v425
        %v470 = vunpack.c.h.b16 %v425
        %v471 = vunpack.c.l.b16 %v426
        %v472 = vunpack.c.h.b16 %v426
        %v473 = vunpack.c.l.b16 %v427
        %v474 = vunpack.c.h.b16 %v427
        %v475 = vunpack.c.l.b16 %v428
        %v476 = vunpack.c.h.b16 %v428
        %v477 = vpack.c.b16 %v447, %v445
        %v478 = vpack.c.b16 %v448, %v446
        %v479 = vpack.c.b16 %v451, %v449
        %v480 = vpack.c.b16 %v452, %v450
        %v481 = vpack.c.b16 %v455, %v453
        %v482 = vpack.c.b16 %v456, %v454
        %v483 = vpack.c.b16 %v459, %v457
        %v484 = vpack.c.b16 %v460, %v458
        %v485 = vpack.c.b16 %v463, %v461
        %v486 = vpack.c.b16 %v464, %v462
        %v487 = vpack.c.b16 %v467, %v465
        %v488 = vpack.c.b16 %v468, %v466
        %v489 = vpack.c.b16 %v471, %v469
        %v490 = vpack.c.b16 %v472, %v470
        %v491 = vpack.c.b16 %v475, %v473
        %v492 = vpack.c.b16 %v476, %v474
        %509 = vmatpush.bf16.msra.mxu0 %v491
        %510 = vmatpush.bf16.msra.mxu0 %v489
        %511 = vmatpush.bf16.msra.mxu0 %v487
        %512 = vmatpush.bf16.msra.mxu0 %v485
        %513 = vmatpush.bf16.msra.mxu0 %v483
        %514 = vmatpush.bf16.msra.mxu0 %v481
        %515 = vmatpush.bf16.msra.mxu0 %v479
        %516 = vmatpush.bf16.msra.mxu0 %v477
        %517 = vmatmul.bf16.gmra.mxu0 %v397
        %v518 = vpop.f32.mrf.mxu0
        %v519 = vadd.f32 0.0, %v518
        %v520 = vpop.f32.mrf.mxu0
        %v521 = vadd.f32 0.0, %v520
        %522 = vmatmul.bf16.gmra.mxu0 %v398
        %v523 = vpop.f32.mrf.mxu0
        %v524 = vadd.f32 0.0, %v523
        %v525 = vpop.f32.mrf.mxu0
        %v526 = vadd.f32 0.0, %v525
        %527 = vmatmul.bf16.gmra.mxu0 %v399
        %v528 = vpop.f32.mrf.mxu0
        %v529 = vadd.f32 0.0, %v528
        %v530 = vpop.f32.mrf.mxu0
        %v531 = vadd.f32 0.0, %v530
        %532 = vmatmul.bf16.gmra.mxu0 %v400
        %v533 = vpop.f32.mrf.mxu0
        %v534 = vadd.f32 0.0, %v533
        %v535 = vpop.f32.mrf.mxu0
        %v536 = vadd.f32 0.0, %v535
        %537 = vmatmul.bf16.gmra.mxu0 %v401
        %v538 = vpop.f32.mrf.mxu0
        %v539 = vadd.f32 0.0, %v538
        %v540 = vpop.f32.mrf.mxu0
        %v541 = vadd.f32 0.0, %v540
        %542 = vmatmul.bf16.gmra.mxu0 %v402
        %v543 = vpop.f32.mrf.mxu0
        %v544 = vadd.f32 0.0, %v543
        %v545 = vpop.f32.mrf.mxu0
        %v546 = vadd.f32 0.0, %v545
        %547 = vmatmul.bf16.gmra.mxu0 %v403
        %v548 = vpop.f32.mrf.mxu0
        %v549 = vadd.f32 0.0, %v548
        %v550 = vpop.f32.mrf.mxu0
        %v551 = vadd.f32 0.0, %v550
        %552 = vmatmul.bf16.gmra.mxu0 %v404
        %v553 = vpop.f32.mrf.mxu0
        %v554 = vadd.f32 0.0, %v553
        %v555 = vpop.f32.mrf.mxu0
        %v556 = vadd.f32 0.0, %v555
        %557 = vmatmul.bf16.gmra.mxu0 %v405
        %v558 = vpop.f32.mrf.mxu0
        %v559 = vadd.f32 0.0, %v558
        %v560 = vpop.f32.mrf.mxu0
        %v561 = vadd.f32 0.0, %v560
        %562 = vmatmul.bf16.gmra.mxu0 %v406
        %v563 = vpop.f32.mrf.mxu0
        %v564 = vadd.f32 0.0, %v563
        %v565 = vpop.f32.mrf.mxu0
        %v566 = vadd.f32 0.0, %v565
        %567 = vmatmul.bf16.gmra.mxu0 %v407
        %v568 = vpop.f32.mrf.mxu0
        %v569 = vadd.f32 0.0, %v568
        %v570 = vpop.f32.mrf.mxu0
        %v571 = vadd.f32 0.0, %v570
        %572 = vmatmul.bf16.gmra.mxu0 %v408
        %v573 = vpop.f32.mrf.mxu0
        %v574 = vadd.f32 0.0, %v573
        %v575 = vpop.f32.mrf.mxu0
        %v576 = vadd.f32 0.0, %v575
        %577 = vmatmul.bf16.gmra.mxu0 %v409
        %v578 = vpop.f32.mrf.mxu0
        %v579 = vadd.f32 0.0, %v578
        %v580 = vpop.f32.mrf.mxu0
        %v581 = vadd.f32 0.0, %v580
        %582 = vmatmul.bf16.gmra.mxu0 %v410
        %v583 = vpop.f32.mrf.mxu0
        %v584 = vadd.f32 0.0, %v583
        %v585 = vpop.f32.mrf.mxu0
        %v586 = vadd.f32 0.0, %v585
        %587 = vmatmul.bf16.gmra.mxu0 %v411
        %v588 = vpop.f32.mrf.mxu0
        %v589 = vadd.f32 0.0, %v588
        %v590 = vpop.f32.mrf.mxu0
        %v591 = vadd.f32 0.0, %v590
        %592 = vmatmul.bf16.gmra.mxu0 %v412
        %v593 = vpop.f32.mrf.mxu0
        %v594 = vadd.f32 0.0, %v593
        %v595 = vpop.f32.mrf.mxu0
        %v596 = vadd.f32 0.0, %v595
        %597 = vdwg.mxu0
        %598 = vmatpush.bf16.msra.mxu0 %v492
        %599 = vmatpush.bf16.msra.mxu0 %v490
        %600 = vmatpush.bf16.msra.mxu0 %v488
        %601 = vmatpush.bf16.msra.mxu0 %v486
        %602 = vmatpush.bf16.msra.mxu0 %v484
        %603 = vmatpush.bf16.msra.mxu0 %v482
        %604 = vmatpush.bf16.msra.mxu0 %v480
        %605 = vmatpush.bf16.msra.mxu0 %v478
        %606 = vmatmul.bf16.gmra.mxu0 %v397
        %v607 = vpop.f32.mrf.mxu0
        %v608 = vadd.f32 0.0, %v607
        %v609 = vpop.f32.mrf.mxu0
        %v610 = vadd.f32 0.0, %v609
        %611 = vmatmul.bf16.gmra.mxu0 %v398
        %v612 = vpop.f32.mrf.mxu0
        %v613 = vadd.f32 0.0, %v612
        %v614 = vpop.f32.mrf.mxu0
        %v615 = vadd.f32 0.0, %v614
        %616 = vmatmul.bf16.gmra.mxu0 %v399
        %v617 = vpop.f32.mrf.mxu0
        %v618 = vadd.f32 0.0, %v617
        %v619 = vpop.f32.mrf.mxu0
        %v620 = vadd.f32 0.0, %v619
        %621 = vmatmul.bf16.gmra.mxu0 %v400
        %v622 = vpop.f32.mrf.mxu0
        %v623 = vadd.f32 0.0, %v622
        %v624 = vpop.f32.mrf.mxu0
        %v625 = vadd.f32 0.0, %v624
        %626 = vmatmul.bf16.gmra.mxu0 %v401
        %v627 = vpop.f32.mrf.mxu0
        %v628 = vadd.f32 0.0, %v627
        %v629 = vpop.f32.mrf.mxu0
        %v630 = vadd.f32 0.0, %v629
        %631 = vmatmul.bf16.gmra.mxu0 %v402
        %v632 = vpop.f32.mrf.mxu0
        %v633 = vadd.f32 0.0, %v632
        %v634 = vpop.f32.mrf.mxu0
        %v635 = vadd.f32 0.0, %v634
        %636 = vmatmul.bf16.gmra.mxu0 %v403
        %v637 = vpop.f32.mrf.mxu0
        %v638 = vadd.f32 0.0, %v637
        %v639 = vpop.f32.mrf.mxu0
        %v640 = vadd.f32 0.0, %v639
        %641 = vmatmul.bf16.gmra.mxu0 %v404
        %v642 = vpop.f32.mrf.mxu0
        %v643 = vadd.f32 0.0, %v642
        %v644 = vpop.f32.mrf.mxu0
        %v645 = vadd.f32 0.0, %v644
        %646 = vmatmul.bf16.gmra.mxu0 %v405
        %v647 = vpop.f32.mrf.mxu0
        %v648 = vadd.f32 0.0, %v647
        %v649 = vpop.f32.mrf.mxu0
        %v650 = vadd.f32 0.0, %v649
        %651 = vmatmul.bf16.gmra.mxu0 %v406
        %v652 = vpop.f32.mrf.mxu0
        %v653 = vadd.f32 0.0, %v652
        %v654 = vpop.f32.mrf.mxu0
        %v655 = vadd.f32 0.0, %v654
        %656 = vmatmul.bf16.gmra.mxu0 %v407
        %v657 = vpop.f32.mrf.mxu0
        %v658 = vadd.f32 0.0, %v657
        %v659 = vpop.f32.mrf.mxu0
        %v660 = vadd.f32 0.0, %v659
        %661 = vmatmul.bf16.gmra.mxu0 %v408
        %v662 = vpop.f32.mrf.mxu0
        %v663 = vadd.f32 0.0, %v662
        %v664 = vpop.f32.mrf.mxu0
        %v665 = vadd.f32 0.0, %v664
        %666 = vmatmul.bf16.gmra.mxu0 %v409
        %v667 = vpop.f32.mrf.mxu0
        %v668 = vadd.f32 0.0, %v667
        %v669 = vpop.f32.mrf.mxu0
        %v670 = vadd.f32 0.0, %v669
        %671 = vmatmul.bf16.gmra.mxu0 %v410
        %v672 = vpop.f32.mrf.mxu0
        %v673 = vadd.f32 0.0, %v672
        %v674 = vpop.f32.mrf.mxu0
        %v675 = vadd.f32 0.0, %v674
        %676 = vmatmul.bf16.gmra.mxu0 %v411
        %v677 = vpop.f32.mrf.mxu0
        %v678 = vadd.f32 0.0, %v677
        %v679 = vpop.f32.mrf.mxu0
        %v680 = vadd.f32 0.0, %v679
        %681 = vmatmul.bf16.gmra.mxu0 %v412
        %v682 = vpop.f32.mrf.mxu0
        %v683 = vadd.f32 0.0, %v682
        %v684 = vpop.f32.mrf.mxu0
        %v685 = vadd.f32 0.0, %v684
        %686 = vdwg.mxu0
        %v687 = vld [vmem:[%s248] sm:$0xff]
        %v688 = vld [vmem:[%s248 + $0x8] sm:$0xff]
        %v689 = vld [vmem:[%s248 + $0x10] sm:$0xff]
        %v690 = vld [vmem:[%s248 + $0x18] sm:$0xff]
        %v691 = vld [vmem:[%s248 + $0x20] sm:$0xff]
        %v692 = vld [vmem:[%s248 + $0x28] sm:$0xff]
        %v693 = vld [vmem:[%s248 + $0x30] sm:$0xff]
        %v694 = vld [vmem:[%s248 + $0x38] sm:$0xff]
        %v695 = vld [vmem:[%s248 + $0x40] sm:$0xff]
        %v696 = vld [vmem:[%s248 + $0x48] sm:$0xff]
        %v697 = vld [vmem:[%s248 + $0x50] sm:$0xff]
        %v698 = vld [vmem:[%s248 + $0x58] sm:$0xff]
        %v699 = vld [vmem:[%s248 + $0x60] sm:$0xff]
        %v700 = vld [vmem:[%s248 + $0x68] sm:$0xff]
        %v701 = vld [vmem:[%s248 + $0x70] sm:$0xff]
        %v702 = vld [vmem:[%s248 + $0x78] sm:$0xff]
        %v703 = vld [vmem:[%s248 + $0x80] sm:$0xff]
        %v704 = vld [vmem:[%s248 + $0x88] sm:$0xff]
        %v705 = vld [vmem:[%s248 + $0x90] sm:$0xff]
        %v706 = vld [vmem:[%s248 + $0x98] sm:$0xff]
        %v707 = vld [vmem:[%s248 + $0xa0] sm:$0xff]
        %v708 = vld [vmem:[%s248 + $0xa8] sm:$0xff]
        %v709 = vld [vmem:[%s248 + $0xb0] sm:$0xff]
        %v710 = vld [vmem:[%s248 + $0xb8] sm:$0xff]
        %v711 = vld [vmem:[%s248 + $0xc0] sm:$0xff]
        %v712 = vld [vmem:[%s248 + $0xc8] sm:$0xff]
        %v713 = vld [vmem:[%s248 + $0xd0] sm:$0xff]
        %v714 = vld [vmem:[%s248 + $0xd8] sm:$0xff]
        %v715 = vld [vmem:[%s248 + $0xe0] sm:$0xff]
        %v716 = vld [vmem:[%s248 + $0xe8] sm:$0xff]
        %v717 = vld [vmem:[%s248 + $0xf0] sm:$0xff]
        %v718 = vld [vmem:[%s248 + $0xf8] sm:$0xff]
        %v719 = vpack.c.bf16 %v521, %v519
        %v720 = vpack.c.bf16 %v610, %v608
        %v721 = vpack.c.bf16 %v526, %v524
        %v722 = vpack.c.bf16 %v615, %v613
        %v723 = vpack.c.bf16 %v531, %v529
        %v724 = vpack.c.bf16 %v620, %v618
        %v725 = vpack.c.bf16 %v536, %v534
        %v726 = vpack.c.bf16 %v625, %v623
        %v727 = vpack.c.bf16 %v541, %v539
        %v728 = vpack.c.bf16 %v630, %v628
        %v729 = vpack.c.bf16 %v546, %v544
        %v730 = vpack.c.bf16 %v635, %v633
        %v731 = vpack.c.bf16 %v551, %v549
        %v732 = vpack.c.bf16 %v640, %v638
        %v733 = vpack.c.bf16 %v556, %v554
        %v734 = vpack.c.bf16 %v645, %v643
        %v735 = vpack.c.bf16 %v561, %v559
        %v736 = vpack.c.bf16 %v650, %v648
        %v737 = vpack.c.bf16 %v566, %v564
        %v738 = vpack.c.bf16 %v655, %v653
        %v739 = vpack.c.bf16 %v571, %v569
        %v740 = vpack.c.bf16 %v660, %v658
        %v741 = vpack.c.bf16 %v576, %v574
        %v742 = vpack.c.bf16 %v665, %v663
        %v743 = vpack.c.bf16 %v581, %v579
        %v744 = vpack.c.bf16 %v670, %v668
        %v745 = vpack.c.bf16 %v586, %v584
        %v746 = vpack.c.bf16 %v675, %v673
        %v747 = vpack.c.bf16 %v591, %v589
        %v748 = vpack.c.bf16 %v680, %v678
        %v749 = vpack.c.bf16 %v596, %v594
        %v750 = vpack.c.bf16 %v685, %v683
        %v783 = vunpack.c.l.b16 %v687
        %v784 = vunpack.c.h.b16 %v687
        %v785 = vunpack.c.l.b16 %v688
        %v786 = vunpack.c.h.b16 %v688
        %v787 = vunpack.c.l.b16 %v689
        %v788 = vunpack.c.h.b16 %v689
        %v789 = vunpack.c.l.b16 %v690
        %v790 = vunpack.c.h.b16 %v690
        %v791 = vunpack.c.l.b16 %v691
        %v792 = vunpack.c.h.b16 %v691
        %v793 = vunpack.c.l.b16 %v692
        %v794 = vunpack.c.h.b16 %v692
        %v795 = vunpack.c.l.b16 %v693
        %v796 = vunpack.c.h.b16 %v693
        %v797 = vunpack.c.l.b16 %v694
        %v798 = vunpack.c.h.b16 %v694
        %v799 = vunpack.c.l.b16 %v695
        %v800 = vunpack.c.h.b16 %v695
        %v801 = vunpack.c.l.b16 %v696
        %v802 = vunpack.c.h.b16 %v696
        %v803 = vunpack.c.l.b16 %v697
        %v804 = vunpack.c.h.b16 %v697
        %v805 = vunpack.c.l.b16 %v698
        %v806 = vunpack.c.h.b16 %v698
        %v807 = vunpack.c.l.b16 %v699
        %v808 = vunpack.c.h.b16 %v699
        %v809 = vunpack.c.l.b16 %v700
        %v810 = vunpack.c.h.b16 %v700
        %v811 = vunpack.c.l.b16 %v701
        %v812 = vunpack.c.h.b16 %v701
        %v813 = vunpack.c.l.b16 %v702
        %v814 = vunpack.c.h.b16 %v702
        %v815 = vunpack.c.l.b16 %v703
        %v816 = vunpack.c.h.b16 %v703
        %v817 = vunpack.c.l.b16 %v704
        %v818 = vunpack.c.h.b16 %v704
        %v819 = vunpack.c.l.b16 %v705
        %v820 = vunpack.c.h.b16 %v705
        %v821 = vunpack.c.l.b16 %v706
        %v822 = vunpack.c.h.b16 %v706
        %v823 = vunpack.c.l.b16 %v707
        %v824 = vunpack.c.h.b16 %v707
        %v825 = vunpack.c.l.b16 %v708
        %v826 = vunpack.c.h.b16 %v708
        %v827 = vunpack.c.l.b16 %v709
        %v828 = vunpack.c.h.b16 %v709
        %v829 = vunpack.c.l.b16 %v710
        %v830 = vunpack.c.h.b16 %v710
        %v831 = vunpack.c.l.b16 %v711
        %v832 = vunpack.c.h.b16 %v711
        %v833 = vunpack.c.l.b16 %v712
        %v834 = vunpack.c.h.b16 %v712
        %v835 = vunpack.c.l.b16 %v713
        %v836 = vunpack.c.h.b16 %v713
        %v837 = vunpack.c.l.b16 %v714
        %v838 = vunpack.c.h.b16 %v714
        %v839 = vunpack.c.l.b16 %v715
        %v840 = vunpack.c.h.b16 %v715
        %v841 = vunpack.c.l.b16 %v716
        %v842 = vunpack.c.h.b16 %v716
        %v843 = vunpack.c.l.b16 %v717
        %v844 = vunpack.c.h.b16 %v717
        %v845 = vunpack.c.l.b16 %v718
        %v846 = vunpack.c.h.b16 %v718
        %v847 = vpack.c.b16 %v785, %v783
        %v848 = vpack.c.b16 %v786, %v784
        %v849 = vpack.c.b16 %v789, %v787
        %v850 = vpack.c.b16 %v790, %v788
        %v851 = vpack.c.b16 %v793, %v791
        %v852 = vpack.c.b16 %v794, %v792
        %v853 = vpack.c.b16 %v797, %v795
        %v854 = vpack.c.b16 %v798, %v796
        %v855 = vpack.c.b16 %v801, %v799
        %v856 = vpack.c.b16 %v802, %v800
        %v857 = vpack.c.b16 %v805, %v803
        %v858 = vpack.c.b16 %v806, %v804
        %v859 = vpack.c.b16 %v809, %v807
        %v860 = vpack.c.b16 %v810, %v808
        %v861 = vpack.c.b16 %v813, %v811
        %v862 = vpack.c.b16 %v814, %v812
        %v863 = vpack.c.b16 %v817, %v815
        %v864 = vpack.c.b16 %v818, %v816
        %v865 = vpack.c.b16 %v821, %v819
        %v866 = vpack.c.b16 %v822, %v820
        %v867 = vpack.c.b16 %v825, %v823
        %v868 = vpack.c.b16 %v826, %v824
        %v869 = vpack.c.b16 %v829, %v827
        %v870 = vpack.c.b16 %v830, %v828
        %v871 = vpack.c.b16 %v833, %v831
        %v872 = vpack.c.b16 %v834, %v832
        %v873 = vpack.c.b16 %v837, %v835
        %v874 = vpack.c.b16 %v838, %v836
        %v875 = vpack.c.b16 %v841, %v839
        %v876 = vpack.c.b16 %v842, %v840
        %v877 = vpack.c.b16 %v845, %v843
        %v878 = vpack.c.b16 %v846, %v844
        %911 = vmatpush.bf16.msra.mxu0 %v733
        %912 = vmatpush.bf16.msra.mxu0 %v731
        %913 = vmatpush.bf16.msra.mxu0 %v729
        %914 = vmatpush.bf16.msra.mxu0 %v727
        %915 = vmatpush.bf16.msra.mxu0 %v725
        %916 = vmatpush.bf16.msra.mxu0 %v723
        %917 = vmatpush.bf16.msra.mxu0 %v721
        %918 = vmatpush.bf16.msra.mxu0 %v719
        %919 = vmatmul.bf16.gmra.mxu0 %v847
        %v920 = vpop.f32.mrf.mxu0
        %v921 = vadd.f32 0.0, %v920
        %v922 = vpop.f32.mrf.mxu0
        %v923 = vadd.f32 0.0, %v922
        %924 = vmatmul.bf16.gmra.mxu0 %v849
        %v925 = vpop.f32.mrf.mxu0
        %v926 = vadd.f32 0.0, %v925
        %v927 = vpop.f32.mrf.mxu0
        %v928 = vadd.f32 0.0, %v927
        %929 = vmatmul.bf16.gmra.mxu0 %v851
        %v930 = vpop.f32.mrf.mxu0
        %v931 = vadd.f32 0.0, %v930
        %v932 = vpop.f32.mrf.mxu0
        %v933 = vadd.f32 0.0, %v932
        %934 = vmatmul.bf16.gmra.mxu0 %v853
        %v935 = vpop.f32.mrf.mxu0
        %v936 = vadd.f32 0.0, %v935
        %v937 = vpop.f32.mrf.mxu0
        %v938 = vadd.f32 0.0, %v937
        %939 = vmatmul.bf16.gmra.mxu0 %v855
        %v940 = vpop.f32.mrf.mxu0
        %v941 = vadd.f32 0.0, %v940
        %v942 = vpop.f32.mrf.mxu0
        %v943 = vadd.f32 0.0, %v942
        %944 = vmatmul.bf16.gmra.mxu0 %v857
        %v945 = vpop.f32.mrf.mxu0
        %v946 = vadd.f32 0.0, %v945
        %v947 = vpop.f32.mrf.mxu0
        %v948 = vadd.f32 0.0, %v947
        %949 = vmatmul.bf16.gmra.mxu0 %v859
        %v950 = vpop.f32.mrf.mxu0
        %v951 = vadd.f32 0.0, %v950
        %v952 = vpop.f32.mrf.mxu0
        %v953 = vadd.f32 0.0, %v952
        %954 = vmatmul.bf16.gmra.mxu0 %v861
        %v955 = vpop.f32.mrf.mxu0
        %v956 = vadd.f32 0.0, %v955
        %v957 = vpop.f32.mrf.mxu0
        %v958 = vadd.f32 0.0, %v957
        %959 = vmatmul.bf16.gmra.mxu0 %v863
        %v960 = vpop.f32.mrf.mxu0
        %v961 = vadd.f32 0.0, %v960
        %v962 = vpop.f32.mrf.mxu0
        %v963 = vadd.f32 0.0, %v962
        %964 = vmatmul.bf16.gmra.mxu0 %v865
        %v965 = vpop.f32.mrf.mxu0
        %v966 = vadd.f32 0.0, %v965
        %v967 = vpop.f32.mrf.mxu0
        %v968 = vadd.f32 0.0, %v967
        %969 = vmatmul.bf16.gmra.mxu0 %v867
        %v970 = vpop.f32.mrf.mxu0
        %v971 = vadd.f32 0.0, %v970
        %v972 = vpop.f32.mrf.mxu0
        %v973 = vadd.f32 0.0, %v972
        %974 = vmatmul.bf16.gmra.mxu0 %v869
        %v975 = vpop.f32.mrf.mxu0
        %v976 = vadd.f32 0.0, %v975
        %v977 = vpop.f32.mrf.mxu0
        %v978 = vadd.f32 0.0, %v977
        %979 = vmatmul.bf16.gmra.mxu0 %v871
        %v980 = vpop.f32.mrf.mxu0
        %v981 = vadd.f32 0.0, %v980
        %v982 = vpop.f32.mrf.mxu0
        %v983 = vadd.f32 0.0, %v982
        %984 = vmatmul.bf16.gmra.mxu0 %v873
        %v985 = vpop.f32.mrf.mxu0
        %v986 = vadd.f32 0.0, %v985
        %v987 = vpop.f32.mrf.mxu0
        %v988 = vadd.f32 0.0, %v987
        %989 = vmatmul.bf16.gmra.mxu0 %v875
        %v990 = vpop.f32.mrf.mxu0
        %v991 = vadd.f32 0.0, %v990
        %v992 = vpop.f32.mrf.mxu0
        %v993 = vadd.f32 0.0, %v992
        %994 = vmatmul.bf16.gmra.mxu0 %v877
        %v995 = vpop.f32.mrf.mxu0
        %v996 = vadd.f32 0.0, %v995
        %v997 = vpop.f32.mrf.mxu0
        %v998 = vadd.f32 0.0, %v997
        %999 = vdwg.mxu0
        %1000 = vmatpush.bf16.msra.mxu0 %v749
        %1001 = vmatpush.bf16.msra.mxu0 %v747
        %1002 = vmatpush.bf16.msra.mxu0 %v745
        %1003 = vmatpush.bf16.msra.mxu0 %v743
        %1004 = vmatpush.bf16.msra.mxu0 %v741
        %1005 = vmatpush.bf16.msra.mxu0 %v739
        %1006 = vmatpush.bf16.msra.mxu0 %v737
        %1007 = vmatpush.bf16.msra.mxu0 %v735
        %1008 = vmatmul.bf16.gmra.mxu0 %v848
        %v1009 = vpop.f32.mrf.mxu0
        %v1010 = vadd.f32 %v921, %v1009
        %v1011 = vpop.f32.mrf.mxu0
        %v1012 = vadd.f32 %v923, %v1011
        %1013 = vmatmul.bf16.gmra.mxu0 %v850
        %v1014 = vpop.f32.mrf.mxu0
        %v1015 = vadd.f32 %v926, %v1014
        %v1016 = vpop.f32.mrf.mxu0
        %v1017 = vadd.f32 %v928, %v1016
        %1018 = vmatmul.bf16.gmra.mxu0 %v852
        %v1019 = vpop.f32.mrf.mxu0
        %v1020 = vadd.f32 %v931, %v1019
        %v1021 = vpop.f32.mrf.mxu0
        %v1022 = vadd.f32 %v933, %v1021
        %1023 = vmatmul.bf16.gmra.mxu0 %v854
        %v1024 = vpop.f32.mrf.mxu0
        %v1025 = vadd.f32 %v936, %v1024
        %v1026 = vpop.f32.mrf.mxu0
        %v1027 = vadd.f32 %v938, %v1026
        %1028 = vmatmul.bf16.gmra.mxu0 %v856
        %v1029 = vpop.f32.mrf.mxu0
        %v1030 = vadd.f32 %v941, %v1029
        %v1031 = vpop.f32.mrf.mxu0
        %v1032 = vadd.f32 %v943, %v1031
        %1033 = vmatmul.bf16.gmra.mxu0 %v858
        %v1034 = vpop.f32.mrf.mxu0
        %v1035 = vadd.f32 %v946, %v1034
        %v1036 = vpop.f32.mrf.mxu0
        %v1037 = vadd.f32 %v948, %v1036
        %1038 = vmatmul.bf16.gmra.mxu0 %v860
        %v1039 = vpop.f32.mrf.mxu0
        %v1040 = vadd.f32 %v951, %v1039
        %v1041 = vpop.f32.mrf.mxu0
        %v1042 = vadd.f32 %v953, %v1041
        %1043 = vmatmul.bf16.gmra.mxu0 %v862
        %v1044 = vpop.f32.mrf.mxu0
        %v1045 = vadd.f32 %v956, %v1044
        %v1046 = vpop.f32.mrf.mxu0
        %v1047 = vadd.f32 %v958, %v1046
        %1048 = vmatmul.bf16.gmra.mxu0 %v864
        %v1049 = vpop.f32.mrf.mxu0
        %v1050 = vadd.f32 %v961, %v1049
        %v1051 = vpop.f32.mrf.mxu0
        %v1052 = vadd.f32 %v963, %v1051
        %1053 = vmatmul.bf16.gmra.mxu0 %v866
        %v1054 = vpop.f32.mrf.mxu0
        %v1055 = vadd.f32 %v966, %v1054
        %v1056 = vpop.f32.mrf.mxu0
        %v1057 = vadd.f32 %v968, %v1056
        %1058 = vmatmul.bf16.gmra.mxu0 %v868
        %v1059 = vpop.f32.mrf.mxu0
        %v1060 = vadd.f32 %v971, %v1059
        %v1061 = vpop.f32.mrf.mxu0
        %v1062 = vadd.f32 %v973, %v1061
        %1063 = vmatmul.bf16.gmra.mxu0 %v870
        %v1064 = vpop.f32.mrf.mxu0
        %v1065 = vadd.f32 %v976, %v1064
        %v1066 = vpop.f32.mrf.mxu0
        %v1067 = vadd.f32 %v978, %v1066
        %1068 = vmatmul.bf16.gmra.mxu0 %v872
        %v1069 = vpop.f32.mrf.mxu0
        %v1070 = vadd.f32 %v981, %v1069
        %v1071 = vpop.f32.mrf.mxu0
        %v1072 = vadd.f32 %v983, %v1071
        %1073 = vmatmul.bf16.gmra.mxu0 %v874
        %v1074 = vpop.f32.mrf.mxu0
        %v1075 = vadd.f32 %v986, %v1074
        %v1076 = vpop.f32.mrf.mxu0
        %v1077 = vadd.f32 %v988, %v1076
        %1078 = vmatmul.bf16.gmra.mxu0 %v876
        %v1079 = vpop.f32.mrf.mxu0
        %v1080 = vadd.f32 %v991, %v1079
        %v1081 = vpop.f32.mrf.mxu0
        %v1082 = vadd.f32 %v993, %v1081
        %1083 = vmatmul.bf16.gmra.mxu0 %v878
        %v1084 = vpop.f32.mrf.mxu0
        %v1085 = vadd.f32 %v996, %v1084
        %v1086 = vpop.f32.mrf.mxu0
        %v1087 = vadd.f32 %v998, %v1086
        %1088 = vdwg.mxu0
        %1089 = vmatpush.bf16.msra.mxu0 %v734
        %1090 = vmatpush.bf16.msra.mxu0 %v732
        %1091 = vmatpush.bf16.msra.mxu0 %v730
        %1092 = vmatpush.bf16.msra.mxu0 %v728
        %1093 = vmatpush.bf16.msra.mxu0 %v726
        %1094 = vmatpush.bf16.msra.mxu0 %v724
        %1095 = vmatpush.bf16.msra.mxu0 %v722
        %1096 = vmatpush.bf16.msra.mxu0 %v720
        %1097 = vmatmul.bf16.gmra.mxu0 %v847
        %v1098 = vpop.f32.mrf.mxu0
        %v1099 = vadd.f32 0.0, %v1098
        %v1100 = vpop.f32.mrf.mxu0
        %v1101 = vadd.f32 0.0, %v1100
        %1102 = vmatmul.bf16.gmra.mxu0 %v849
        %v1103 = vpop.f32.mrf.mxu0
        %v1104 = vadd.f32 0.0, %v1103
        %v1105 = vpop.f32.mrf.mxu0
        %v1106 = vadd.f32 0.0, %v1105
        %1107 = vmatmul.bf16.gmra.mxu0 %v851
        %v1108 = vpop.f32.mrf.mxu0
        %v1109 = vadd.f32 0.0, %v1108
        %v1110 = vpop.f32.mrf.mxu0
        %v1111 = vadd.f32 0.0, %v1110
        %1112 = vmatmul.bf16.gmra.mxu0 %v853
        %v1113 = vpop.f32.mrf.mxu0
        %v1114 = vadd.f32 0.0, %v1113
        %v1115 = vpop.f32.mrf.mxu0
        %v1116 = vadd.f32 0.0, %v1115
        %1117 = vmatmul.bf16.gmra.mxu0 %v855
        %v1118 = vpop.f32.mrf.mxu0
        %v1119 = vadd.f32 0.0, %v1118
        %v1120 = vpop.f32.mrf.mxu0
        %v1121 = vadd.f32 0.0, %v1120
        %1122 = vmatmul.bf16.gmra.mxu0 %v857
        %v1123 = vpop.f32.mrf.mxu0
        %v1124 = vadd.f32 0.0, %v1123
        %v1125 = vpop.f32.mrf.mxu0
        %v1126 = vadd.f32 0.0, %v1125
        %1127 = vmatmul.bf16.gmra.mxu0 %v859
        %v1128 = vpop.f32.mrf.mxu0
        %v1129 = vadd.f32 0.0, %v1128
        %v1130 = vpop.f32.mrf.mxu0
        %v1131 = vadd.f32 0.0, %v1130
        %1132 = vmatmul.bf16.gmra.mxu0 %v861
        %v1133 = vpop.f32.mrf.mxu0
        %v1134 = vadd.f32 0.0, %v1133
        %v1135 = vpop.f32.mrf.mxu0
        %v1136 = vadd.f32 0.0, %v1135
        %1137 = vmatmul.bf16.gmra.mxu0 %v863
        %v1138 = vpop.f32.mrf.mxu0
        %v1139 = vadd.f32 0.0, %v1138
        %v1140 = vpop.f32.mrf.mxu0
        %v1141 = vadd.f32 0.0, %v1140
        %1142 = vmatmul.bf16.gmra.mxu0 %v865
        %v1143 = vpop.f32.mrf.mxu0
        %v1144 = vadd.f32 0.0, %v1143
        %v1145 = vpop.f32.mrf.mxu0
        %v1146 = vadd.f32 0.0, %v1145
        %1147 = vmatmul.bf16.gmra.mxu0 %v867
        %v1148 = vpop.f32.mrf.mxu0
        %v1149 = vadd.f32 0.0, %v1148
        %v1150 = vpop.f32.mrf.mxu0
        %v1151 = vadd.f32 0.0, %v1150
        %1152 = vmatmul.bf16.gmra.mxu0 %v869
        %v1153 = vpop.f32.mrf.mxu0
        %v1154 = vadd.f32 0.0, %v1153
        %v1155 = vpop.f32.mrf.mxu0
        %v1156 = vadd.f32 0.0, %v1155
        %1157 = vmatmul.bf16.gmra.mxu0 %v871
        %v1158 = vpop.f32.mrf.mxu0
        %v1159 = vadd.f32 0.0, %v1158
        %v1160 = vpop.f32.mrf.mxu0
        %v1161 = vadd.f32 0.0, %v1160
        %1162 = vmatmul.bf16.gmra.mxu0 %v873
        %v1163 = vpop.f32.mrf.mxu0
        %v1164 = vadd.f32 0.0, %v1163
        %v1165 = vpop.f32.mrf.mxu0
        %v1166 = vadd.f32 0.0, %v1165
        %1167 = vmatmul.bf16.gmra.mxu0 %v875
        %v1168 = vpop.f32.mrf.mxu0
        %v1169 = vadd.f32 0.0, %v1168
        %v1170 = vpop.f32.mrf.mxu0
        %v1171 = vadd.f32 0.0, %v1170
        %1172 = vmatmul.bf16.gmra.mxu0 %v877
        %v1173 = vpop.f32.mrf.mxu0
        %v1174 = vadd.f32 0.0, %v1173
        %v1175 = vpop.f32.mrf.mxu0
        %v1176 = vadd.f32 0.0, %v1175
        %1177 = vdwg.mxu0
        %1178 = vmatpush.bf16.msra.mxu0 %v750
        %1179 = vmatpush.bf16.msra.mxu0 %v748
        %1180 = vmatpush.bf16.msra.mxu0 %v746
        %1181 = vmatpush.bf16.msra.mxu0 %v744
        %1182 = vmatpush.bf16.msra.mxu0 %v742
        %1183 = vmatpush.bf16.msra.mxu0 %v740
        %1184 = vmatpush.bf16.msra.mxu0 %v738
        %1185 = vmatpush.bf16.msra.mxu0 %v736
        %1186 = vmatmul.bf16.gmra.mxu0 %v848
        %v1187 = vpop.f32.mrf.mxu0
        %v1188 = vadd.f32 %v1099, %v1187
        %v1189 = vpop.f32.mrf.mxu0
        %v1190 = vadd.f32 %v1101, %v1189
        %1191 = vmatmul.bf16.gmra.mxu0 %v850
        %v1192 = vpop.f32.mrf.mxu0
        %v1193 = vadd.f32 %v1104, %v1192
        %v1194 = vpop.f32.mrf.mxu0
        %v1195 = vadd.f32 %v1106, %v1194
        %1196 = vmatmul.bf16.gmra.mxu0 %v852
        %v1197 = vpop.f32.mrf.mxu0
        %v1198 = vadd.f32 %v1109, %v1197
        %v1199 = vpop.f32.mrf.mxu0
        %v1200 = vadd.f32 %v1111, %v1199
        %1201 = vmatmul.bf16.gmra.mxu0 %v854
        %v1202 = vpop.f32.mrf.mxu0
        %v1203 = vadd.f32 %v1114, %v1202
        %v1204 = vpop.f32.mrf.mxu0
        %v1205 = vadd.f32 %v1116, %v1204
        %1206 = vmatmul.bf16.gmra.mxu0 %v856
        %v1207 = vpop.f32.mrf.mxu0
        %v1208 = vadd.f32 %v1119, %v1207
        %v1209 = vpop.f32.mrf.mxu0
        %v1210 = vadd.f32 %v1121, %v1209
        %1211 = vmatmul.bf16.gmra.mxu0 %v858
        %v1212 = vpop.f32.mrf.mxu0
        %v1213 = vadd.f32 %v1124, %v1212
        %v1214 = vpop.f32.mrf.mxu0
        %v1215 = vadd.f32 %v1126, %v1214
        %1216 = vmatmul.bf16.gmra.mxu0 %v860
        %v1217 = vpop.f32.mrf.mxu0
        %v1218 = vadd.f32 %v1129, %v1217
        %v1219 = vpop.f32.mrf.mxu0
        %v1220 = vadd.f32 %v1131, %v1219
        %1221 = vmatmul.bf16.gmra.mxu0 %v862
        %v1222 = vpop.f32.mrf.mxu0
        %v1223 = vadd.f32 %v1134, %v1222
        %v1224 = vpop.f32.mrf.mxu0
        %v1225 = vadd.f32 %v1136, %v1224
        %1226 = vmatmul.bf16.gmra.mxu0 %v864
        %v1227 = vpop.f32.mrf.mxu0
        %v1228 = vadd.f32 %v1139, %v1227
        %v1229 = vpop.f32.mrf.mxu0
        %v1230 = vadd.f32 %v1141, %v1229
        %1231 = vmatmul.bf16.gmra.mxu0 %v866
        %v1232 = vpop.f32.mrf.mxu0
        %v1233 = vadd.f32 %v1144, %v1232
        %v1234 = vpop.f32.mrf.mxu0
        %v1235 = vadd.f32 %v1146, %v1234
        %1236 = vmatmul.bf16.gmra.mxu0 %v868
        %v1237 = vpop.f32.mrf.mxu0
        %v1238 = vadd.f32 %v1149, %v1237
        %v1239 = vpop.f32.mrf.mxu0
        %v1240 = vadd.f32 %v1151, %v1239
        %1241 = vmatmul.bf16.gmra.mxu0 %v870
        %v1242 = vpop.f32.mrf.mxu0
        %v1243 = vadd.f32 %v1154, %v1242
        %v1244 = vpop.f32.mrf.mxu0
        %v1245 = vadd.f32 %v1156, %v1244
        %1246 = vmatmul.bf16.gmra.mxu0 %v872
        %v1247 = vpop.f32.mrf.mxu0
        %v1248 = vadd.f32 %v1159, %v1247
        %v1249 = vpop.f32.mrf.mxu0
        %v1250 = vadd.f32 %v1161, %v1249
        %1251 = vmatmul.bf16.gmra.mxu0 %v874
        %v1252 = vpop.f32.mrf.mxu0
        %v1253 = vadd.f32 %v1164, %v1252
        %v1254 = vpop.f32.mrf.mxu0
        %v1255 = vadd.f32 %v1166, %v1254
        %1256 = vmatmul.bf16.gmra.mxu0 %v876
        %v1257 = vpop.f32.mrf.mxu0
        %v1258 = vadd.f32 %v1169, %v1257
        %v1259 = vpop.f32.mrf.mxu0
        %v1260 = vadd.f32 %v1171, %v1259
        %1261 = vmatmul.bf16.gmra.mxu0 %v878
        %v1262 = vpop.f32.mrf.mxu0
        %v1263 = vadd.f32 %v1174, %v1262
        %v1264 = vpop.f32.mrf.mxu0
        %v1265 = vadd.f32 %v1176, %v1264
        %1266 = vdwg.mxu0
        %v1267 = vld [vmem:[%s267] sm:$0x1]
        %v1269 = vperm.slane %v1267, 0
        %v1271 = vadd.f32 %v1010, %v1269
        %v1272 = vadd.f32 %v1012, %v1269
        %v1273 = vadd.f32 %v1015, %v1269
        %v1274 = vadd.f32 %v1017, %v1269
        %v1275 = vadd.f32 %v1020, %v1269
        %v1276 = vadd.f32 %v1022, %v1269
        %v1277 = vadd.f32 %v1025, %v1269
        %v1278 = vadd.f32 %v1027, %v1269
        %v1279 = vadd.f32 %v1030, %v1269
        %v1280 = vadd.f32 %v1032, %v1269
        %v1281 = vadd.f32 %v1035, %v1269
        %v1282 = vadd.f32 %v1037, %v1269
        %v1283 = vadd.f32 %v1040, %v1269
        %v1284 = vadd.f32 %v1042, %v1269
        %v1285 = vadd.f32 %v1045, %v1269
        %v1286 = vadd.f32 %v1047, %v1269
        %v1287 = vadd.f32 %v1050, %v1269
        %v1288 = vadd.f32 %v1052, %v1269
        %v1289 = vadd.f32 %v1055, %v1269
        %v1290 = vadd.f32 %v1057, %v1269
        %v1291 = vadd.f32 %v1060, %v1269
        %v1292 = vadd.f32 %v1062, %v1269
        %v1293 = vadd.f32 %v1065, %v1269
        %v1294 = vadd.f32 %v1067, %v1269
        %v1295 = vadd.f32 %v1070, %v1269
        %v1296 = vadd.f32 %v1072, %v1269
        %v1297 = vadd.f32 %v1075, %v1269
        %v1298 = vadd.f32 %v1077, %v1269
        %v1299 = vadd.f32 %v1080, %v1269
        %v1300 = vadd.f32 %v1082, %v1269
        %v1301 = vadd.f32 %v1085, %v1269
        %v1302 = vadd.f32 %v1087, %v1269
        %p1303 = scmp.ne.s32.totalorder %s23, 2
        // Predicated region
        $region57: #{tpu_custom_call.1} parent=35 // pred_check
          %p1304 = pneg %p1303
        $region58: #{tpu_custom_call.1} parent=35 // pred_check_branch
          %1306 = sbr.rel (%p1304) target = $region60
        $region59: #{tpu_custom_call.1} parent=35 // pred_region
          %v1307 = vmax.f32 %v1271, 0.0
          %v1308 = vmax.f32 %v1272, 0.0
          %v1309 = vmax.f32 %v1273, 0.0
          %v1310 = vmax.f32 %v1274, 0.0
          %v1311 = vmax.f32 %v1275, 0.0
          %v1312 = vmax.f32 %v1276, 0.0
          %v1313 = vmax.f32 %v1277, 0.0
          %v1314 = vmax.f32 %v1278, 0.0
          %v1315 = vmax.f32 %v1279, 0.0
          %v1316 = vmax.f32 %v1280, 0.0
          %v1317 = vmax.f32 %v1281, 0.0
          %v1318 = vmax.f32 %v1282, 0.0
          %v1319 = vmax.f32 %v1283, 0.0
          %v1320 = vmax.f32 %v1284, 0.0
          %v1321 = vmax.f32 %v1285, 0.0
          %v1322 = vmax.f32 %v1286, 0.0
          %v1323 = vmax.f32 %v1287, 0.0
          %v1324 = vmax.f32 %v1288, 0.0
          %v1325 = vmax.f32 %v1289, 0.0
          %v1326 = vmax.f32 %v1290, 0.0
          %v1327 = vmax.f32 %v1291, 0.0
          %v1328 = vmax.f32 %v1292, 0.0
          %v1329 = vmax.f32 %v1293, 0.0
          %v1330 = vmax.f32 %v1294, 0.0
          %v1331 = vmax.f32 %v1295, 0.0
          %v1332 = vmax.f32 %v1296, 0.0
          %v1333 = vmax.f32 %v1297, 0.0
          %v1334 = vmax.f32 %v1298, 0.0
          %v1335 = vmax.f32 %v1299, 0.0
          %v1336 = vmax.f32 %v1300, 0.0
          %v1337 = vmax.f32 %v1301, 0.0
          %v1338 = vmax.f32 %v1302, 0.0
          %v1339 = vadd.f32 %v1307, %v1188
          %v1340 = vadd.f32 %v1308, %v1190
          %v1341 = vadd.f32 %v1309, %v1193
          %v1342 = vadd.f32 %v1310, %v1195
          %v1343 = vadd.f32 %v1311, %v1198
          %v1344 = vadd.f32 %v1312, %v1200
          %v1345 = vadd.f32 %v1313, %v1203
          %v1346 = vadd.f32 %v1314, %v1205
          %v1347 = vadd.f32 %v1315, %v1208
          %v1348 = vadd.f32 %v1316, %v1210
          %v1349 = vadd.f32 %v1317, %v1213
          %v1350 = vadd.f32 %v1318, %v1215
          %v1351 = vadd.f32 %v1319, %v1218
          %v1352 = vadd.f32 %v1320, %v1220
          %v1353 = vadd.f32 %v1321, %v1223
          %v1354 = vadd.f32 %v1322, %v1225
          %v1355 = vadd.f32 %v1323, %v1228
          %v1356 = vadd.f32 %v1324, %v1230
          %v1357 = vadd.f32 %v1325, %v1233
          %v1358 = vadd.f32 %v1326, %v1235
          %v1359 = vadd.f32 %v1327, %v1238
          %v1360 = vadd.f32 %v1328, %v1240
          %v1361 = vadd.f32 %v1329, %v1243
          %v1362 = vadd.f32 %v1330, %v1245
          %v1363 = vadd.f32 %v1331, %v1248
          %v1364 = vadd.f32 %v1332, %v1250
          %v1365 = vadd.f32 %v1333, %v1253
          %v1366 = vadd.f32 %v1334, %v1255
          %v1367 = vadd.f32 %v1335, %v1258
          %v1368 = vadd.f32 %v1336, %v1260
          %v1369 = vadd.f32 %v1337, %v1263
          %v1370 = vadd.f32 %v1338, %v1265
          %1371 = vst [vmem:[#allocation2] sm:$0xff] %v1339
          %1372 = vst [vmem:[#allocation2 + $0x8] sm:$0xff] %v1340
          %1373 = vst [vmem:[#allocation2 + $0x10] sm:$0xff] %v1341
          %1374 = vst [vmem:[#allocation2 + $0x18] sm:$0xff] %v1342
          %1375 = vst [vmem:[#allocation2 + $0x20] sm:$0xff] %v1343
          %1376 = vst [vmem:[#allocation2 + $0x28] sm:$0xff] %v1344
          %1377 = vst [vmem:[#allocation2 + $0x30] sm:$0xff] %v1345
          %1378 = vst [vmem:[#allocation2 + $0x38] sm:$0xff] %v1346
          %1379 = vst [vmem:[#allocation2 + $0x40] sm:$0xff] %v1347
          %1380 = vst [vmem:[#allocation2 + $0x48] sm:$0xff] %v1348
          %1381 = vst [vmem:[#allocation2 + $0x50] sm:$0xff] %v1349
          %1382 = vst [vmem:[#allocation2 + $0x58] sm:$0xff] %v1350
          %1383 = vst [vmem:[#allocation2 + $0x60] sm:$0xff] %v1351
          %1384 = vst [vmem:[#allocation2 + $0x68] sm:$0xff] %v1352
          %1385 = vst [vmem:[#allocation2 + $0x70] sm:$0xff] %v1353
          %1386 = vst [vmem:[#allocation2 + $0x78] sm:$0xff] %v1354
          %1387 = vst [vmem:[#allocation2 + $0x80] sm:$0xff] %v1355
          %1388 = vst [vmem:[#allocation2 + $0x88] sm:$0xff] %v1356
          %1389 = vst [vmem:[#allocation2 + $0x90] sm:$0xff] %v1357
          %1390 = vst [vmem:[#allocation2 + $0x98] sm:$0xff] %v1358
          %1391 = vst [vmem:[#allocation2 + $0xa0] sm:$0xff] %v1359
          %1392 = vst [vmem:[#allocation2 + $0xa8] sm:$0xff] %v1360
          %1393 = vst [vmem:[#allocation2 + $0xb0] sm:$0xff] %v1361
          %1394 = vst [vmem:[#allocation2 + $0xb8] sm:$0xff] %v1362
          %1395 = vst [vmem:[#allocation2 + $0xc0] sm:$0xff] %v1363
          %1396 = vst [vmem:[#allocation2 + $0xc8] sm:$0xff] %v1364
          %1397 = vst [vmem:[#allocation2 + $0xd0] sm:$0xff] %v1365
          %1398 = vst [vmem:[#allocation2 + $0xd8] sm:$0xff] %v1366
          %1399 = vst [vmem:[#allocation2 + $0xe0] sm:$0xff] %v1367
          %1400 = vst [vmem:[#allocation2 + $0xe8] sm:$0xff] %v1368
          %1401 = vst [vmem:[#allocation2 + $0xf0] sm:$0xff] %v1369
          %1402 = vst [vmem:[#allocation2 + $0xf8] sm:$0xff] %v1370
        $region60: #{tpu_custom_call.1} parent=35 // pred_fallthru
          _
        %p1403 = scmp.eq.s32.totalorder %s23, 2
        // Predicated region
        $region61: #{tpu_custom_call.1} parent=35 // pred_check
          %p1404 = pneg %p1403
        $region62: #{tpu_custom_call.1} parent=35 // pred_check_branch
          %1406 = sbr.rel (%p1404) target = $region64
        $region63: #{tpu_custom_call.1} parent=35 // pred_region
          %1407 = vst [vmem:[#allocation11] sm:$0xff] %v1271
          %1408 = vst [vmem:[#allocation11 + $0x8] sm:$0xff] %v1272
          %1409 = vst [vmem:[#allocation11 + $0x10] sm:$0xff] %v1273
          %1410 = vst [vmem:[#allocation11 + $0x18] sm:$0xff] %v1274
          %1411 = vst [vmem:[#allocation11 + $0x20] sm:$0xff] %v1275
          %1412 = vst [vmem:[#allocation11 + $0x28] sm:$0xff] %v1276
          %1413 = vst [vmem:[#allocation11 + $0x30] sm:$0xff] %v1277
          %1414 = vst [vmem:[#allocation11 + $0x38] sm:$0xff] %v1278
          %1415 = vst [vmem:[#allocation11 + $0x40] sm:$0xff] %v1279
          %1416 = vst [vmem:[#allocation11 + $0x48] sm:$0xff] %v1280
          %1417 = vst [vmem:[#allocation11 + $0x50] sm:$0xff] %v1281
          %1418 = vst [vmem:[#allocation11 + $0x58] sm:$0xff] %v1282
          %1419 = vst [vmem:[#allocation11 + $0x60] sm:$0xff] %v1283
          %1420 = vst [vmem:[#allocation11 + $0x68] sm:$0xff] %v1284
          %1421 = vst [vmem:[#allocation11 + $0x70] sm:$0xff] %v1285
          %1422 = vst [vmem:[#allocation11 + $0x78] sm:$0xff] %v1286
          %1423 = vst [vmem:[#allocation11 + $0x80] sm:$0xff] %v1287
          %1424 = vst [vmem:[#allocation11 + $0x88] sm:$0xff] %v1288
          %1425 = vst [vmem:[#allocation11 + $0x90] sm:$0xff] %v1289
          %1426 = vst [vmem:[#allocation11 + $0x98] sm:$0xff] %v1290
          %1427 = vst [vmem:[#allocation11 + $0xa0] sm:$0xff] %v1291
          %1428 = vst [vmem:[#allocation11 + $0xa8] sm:$0xff] %v1292
          %1429 = vst [vmem:[#allocation11 + $0xb0] sm:$0xff] %v1293
          %1430 = vst [vmem:[#allocation11 + $0xb8] sm:$0xff] %v1294
          %1431 = vst [vmem:[#allocation11 + $0xc0] sm:$0xff] %v1295
          %1432 = vst [vmem:[#allocation11 + $0xc8] sm:$0xff] %v1296
          %1433 = vst [vmem:[#allocation11 + $0xd0] sm:$0xff] %v1297
          %1434 = vst [vmem:[#allocation11 + $0xd8] sm:$0xff] %v1298
          %1435 = vst [vmem:[#allocation11 + $0xe0] sm:$0xff] %v1299
          %1436 = vst [vmem:[#allocation11 + $0xe8] sm:$0xff] %v1300
          %1437 = vst [vmem:[#allocation11 + $0xf0] sm:$0xff] %v1301
          %1438 = vst [vmem:[#allocation11 + $0xf8] sm:$0xff] %v1302
        $region64: #{tpu_custom_call.1} parent=35 // pred_fallthru
          _
        // Predicated region
        $region65: #{tpu_custom_call.1} parent=35 // pred_check
          %p1439 = pneg %p135
        $region66: #{tpu_custom_call.1} parent=35 // pred_check_branch
          %1441 = sbr.rel (%p1439) target = $region68
        $region67: #{tpu_custom_call.1} parent=35 // pred_region
          %1443 = vsyncadd [#allocation5], 0
          %s1444 = sshll.u32 [#allocation11], 4
          %s1445 = int_to_ptr.vmem [resolvable:$true] %s1444
          %s1446 = sshll.u32 %s4, 4
          %s1447 = int_to_ptr.hbm [resolvable:$true] %s1446
          %1452 = dma.vmem_to_hbm [thread:$0]  %s1445, 4096, %s1447, [#allocation5], 128, 128, 8
        $region68: #{tpu_custom_call.1} parent=35 // pred_fallthru
          _
        // Predicated region
        $region69: #{tpu_custom_call.1} parent=35 // pred_check
          %p1453 = pneg %p135
        $region70: #{tpu_custom_call.1} parent=35 // pred_check_branch
          %1455 = sbr.rel (%p1453) target = $region72
        $region71: #{tpu_custom_call.1} parent=35 // pred_region
          %1457 = dma.done [#allocation5], 4096
        $region72: #{tpu_custom_call.1} parent=35 // pred_fallthru
          _
      $region36: #{tpu_custom_call.1} parent=5 // pred_fallthru
        _
      %p1458 = scmp.le.s32.totalorder 2, %s18
      // Predicated region
      $region73: #{tpu_custom_call.1} parent=5 // pred_check
        %p1459 = pneg %p1458
      $region74: #{tpu_custom_call.1} parent=5 // pred_check_branch
        %1461 = sbr.rel (%p1459) target = $region76
      $region75: #{tpu_custom_call.1} parent=5 // pred_region
        %s1462 = ssub.s32 %s18, 2
      $region76: #{tpu_custom_call.1} parent=5 // pred_fallthru
        _
    $region6: #{tpu_custom_call.1} parent=1 // loop_footer
      %s22 = sadd.s32 1, %s18
    $region7: #{tpu_custom_call.1} parent=1 // loop_footer_branch
      %17 = sbr.rel target = $region3
    $region8: #{tpu_custom_call.1} parent=1 // loop_exit
      _
    %1463 = vsyncpa [#allocation4], 1
    %s1464 = scalar_lea.sflag [#allocation4], 1
    %1465 = vsyncpa %s1464, 1
    %1466 = vsyncpa [#allocation7], 1
    %s1467 = scalar_lea.sflag [#allocation7], 1
    %1468 = vsyncpa %s1467, 1
    %1469 = vsyncpa [#allocation10], 1
    %s1470 = scalar_lea.sflag [#allocation10], 1
    %1471 = vsyncpa %s1470, 1
    %1472 = vsyncpa [#allocation5], 1
    %s1473 = scalar_lea.sflag [#allocation5], 1
    %1474 = vsyncpa %s1473, 1

</llo_original>
